<compile_context>
chip_gen: v5e
topology: v5e:2x2
jax: 0.10.0
libtpu: 0.0.40
codegen_flags: <defaults>
</compile_context>

<pallas_src>
import functools
import math

import jax
import jax.numpy as jnp
from jax.experimental import pallas as pl
from jax.experimental.pallas import tpu as pltpu

W0 = 30.0          # Sine.W0 (frequency)
N_NEURONS = 128    # n_neurons default
IN_DIMS = 3        # NoEmbedding -> raw 3-D coordinates
K_PAD = 8          # pad tiny contraction dim (3 -> 8) for clean MXU tiling


def _siren_kernel(x_ref, w1_ref, b1_ref, w2_ref, b2_ref, o_ref):
    # Layer 1 (Siren): pre = (w0*W1) @ x + (w0*b1)  -> sin(pre)
    pre = jnp.dot(w1_ref[...], x_ref[...], preferred_element_type=jnp.float32)
    h = jnp.sin(pre + b1_ref[...])                              # (128, TILE_N)
    # Layer 2 (Linear 128 -> 1): VPU mul + cross-feature (sublane) reduce.
    # Keeps the result lane-dense over points (unmasked vector stores).
    o_ref[...] = jnp.sum(h * w2_ref[...], axis=0, keepdims=True) + b2_ref[...]


def _round_up(n, m):
    return ((n + m - 1) // m) * m


@functools.partial(jax.jit, static_argnames=("tile_n",))
def network_forward(x, w1, b1, w2, b2, *, tile_n=4096):
    """Pallas forward of `Network`.

    x : (N, 3) float32 points
    w1: (128, 3), b1: (128,)   -- torch nn.Linear(3, 128) params (Siren layer)
    w2: (1, 128), b2: (1,)     -- torch nn.Linear(128, 1) params
    Returns mlp(x).squeeze(): shape (N,) for N > 1, scalar for N == 1.
    """
    n = x.shape[0]
    tile = min(tile_n, _round_up(n, 128))        # tile_n sized to stay well under
    n_pad = _round_up(n, tile)                   # scoped VMEM on v5e/v6e/v7x

    # Points on lanes: (N, 3) -> (K_PAD, N_pad) lane-dense slab, zero-padded.
    xt = jnp.zeros((K_PAD, n_pad), jnp.float32)
    xt = xt.at[:IN_DIMS, :n].set(x.astype(jnp.float32).T)

    # Fold w0 into the constant layer-1 parameters (weight AND bias).
    w1k = jnp.zeros((N_NEURONS, K_PAD), jnp.float32)
    w1k = w1k.at[:, :IN_DIMS].set((W0 * w1).astype(jnp.float32))
    b1k = (W0 * b1).astype(jnp.float32).reshape(N_NEURONS, 1)
    w2k = w2.astype(jnp.float32).reshape(1, N_NEURONS).T        # (128, 1)
    b2k = b2.astype(jnp.float32).reshape(1, 1)

    grid = (n_pad // tile,)
    out = pl.pallas_call(
        _siren_kernel,
        out_shape=jax.ShapeDtypeStruct((1, n_pad), jnp.float32),
        grid_spec=pltpu.PrefetchScalarGridSpec(
            num_scalar_prefetch=0,
            grid=grid,
            in_specs=[
                # point tile: lane-dense, pipelined over the grid
                pl.BlockSpec((K_PAD, tile), lambda i: (0, i)),
                # tiny constant params: constant block index -> resident in VMEM
                pl.BlockSpec((N_NEURONS, K_PAD), lambda i: (0, 0)),
                pl.BlockSpec((N_NEURONS, 1), lambda i: (0, 0)),
                pl.BlockSpec((N_NEURONS, 1), lambda i: (0, 0)),
                pl.BlockSpec((1, 1), lambda i: (0, 0)),
            ],
            out_specs=pl.BlockSpec((1, tile), lambda i: (0, i)),
        ),
        compiler_params=pltpu.CompilerParams(
            # compute-bound (128 sins/point): shard points over v7x's 2 TCs;
            # harmless no-op on single-TC v5e/v6e.
            dimension_semantics=("parallel",),
        ),
    )(xt, w1k, b1k, w2k, b2k)

    # torch: self.mlp(x).squeeze()  (removes all size-1 dims: scalar when N == 1)
    return jnp.squeeze(out[0, :n])


if __name__ == "__main__":
    key = jax.random.PRNGKey(0)
    k1, k2, k3, k4, k5 = jax.random.split(key, 5)

    # Small deterministic problem: 257 points (non-multiple of 128 exercises padding).
    N = 257
    x = jax.random.uniform(k1, (N, IN_DIMS), jnp.float32, minval=-1.0, maxval=1.0)

    # 'uniform siren' init, first layer: U(-1/in_dim, 1/in_dim) for W and b.
    std1 = 1.0 / IN_DIMS
    w1 = jax.random.uniform(k2, (N_NEURONS, IN_DIMS), jnp.float32, -std1, std1)
    b1 = jax.random.uniform(k3, (N_NEURONS,), jnp.float32, -std1, std1)
    # Final torch.nn.Linear(128, 1): default-style U(-1/sqrt(128), 1/sqrt(128)).
    std2 = 1.0 / math.sqrt(N_NEURONS)
    w2 = jax.random.uniform(k4, (1, N_NEURONS), jnp.float32, -std2, std2)
    b2 = jax.random.uniform(k5, (1,), jnp.float32, -std2, std2)

    # Small tile for the demo so the grid has several steps.
    out = jax.block_until_ready(network_forward(x, w1, b1, w2, b2, tile_n=128))

    # Pure-JAX reference of the torch forward.
    ref = jnp.squeeze(jnp.sin(W0 * (x @ w1.T + b1)) @ w2.T + b2)
    assert out.shape == ref.shape, (out.shape, ref.shape)
    assert jnp.allclose(out, ref, atol=1e-4, rtol=1e-4), float(
        jnp.max(jnp.abs(out - ref)))
    print("KERNEL_OK")
</pallas_src>

<mosaic_0001>
module attributes {stable_mosaic.version = 11 : i64} {
  func.func @_siren_kernel(%arg0: i32, %arg1: memref<8x128xf32, #tpu.memory_space<vmem>>, %arg2: memref<128x8xf32, #tpu.memory_space<vmem>>, %arg3: memref<128x1xf32, #tpu.memory_space<vmem>>, %arg4: memref<128x1xf32, #tpu.memory_space<vmem>>, %arg5: memref<1x1xf32, #tpu.memory_space<vmem>>, %arg6: memref<1x128xf32, #tpu.memory_space<vmem>>) attributes {dimension_semantics = [#tpu.dimension_semantics<parallel>], iteration_bounds = array<i64: 3>, scalar_prefetch = 0 : i64, scratch_operands = 0 : i64, tpu.core_type = #tpu.core_type<tc>, window_params = [{transform_indices = @transform_0, window_bounds = array<i64: 8, 128>}, {pipeline_mode = #tpu.pipeline_mode<synchronous>, transform_indices = @transform_1, window_bounds = array<i64: 128, 8>}, {pipeline_mode = #tpu.pipeline_mode<synchronous>, transform_indices = @transform_2, window_bounds = array<i64: 128, 1>}, {pipeline_mode = #tpu.pipeline_mode<synchronous>, transform_indices = @transform_3, window_bounds = array<i64: 128, 1>}, {pipeline_mode = #tpu.pipeline_mode<synchronous>, transform_indices = @transform_4, window_bounds = array<i64: 1, 1>}, {transform_indices = @transform_5, window_bounds = array<i64: 1, 128>}]} {
    %c0 = arith.constant 0 : index
    %c0_0 = arith.constant 0 : index
    %0 = vector.load %arg2[%c0, %c0_0] : memref<128x8xf32, #tpu.memory_space<vmem>>, vector<128x8xf32>
    %c0_1 = arith.constant 0 : index
    %c0_2 = arith.constant 0 : index
    %1 = vector.load %arg1[%c0_1, %c0_2] : memref<8x128xf32, #tpu.memory_space<vmem>>, vector<8x128xf32>
    %cst = arith.constant dense<0.000000e+00> : vector<128x128xf32>
    %2 = tpu.matmul %0, %1, %cst {dimension_numbers = #tpu.dot_dimension_numbers<[1], [0], [0], [1], [0, 0, 1, 1], [], []>} : vector<128x8xf32>, vector<8x128xf32>, vector<128x128xf32> -> vector<128x128xf32>
    %c0_3 = arith.constant 0 : index
    %c0_4 = arith.constant 0 : index
    %3 = vector.load %arg3[%c0_3, %c0_4] : memref<128x1xf32, #tpu.memory_space<vmem>>, vector<128x1xf32>
    %4 = vector.broadcast %3 : vector<128x1xf32> to vector<128x128xf32>
    %5 = arith.addf %2, %4 : vector<128x128xf32>
    %6 = math.sin %5 : vector<128x128xf32>
    %c0_5 = arith.constant 0 : index
    %c0_6 = arith.constant 0 : index
    %7 = vector.load %arg4[%c0_5, %c0_6] : memref<128x1xf32, #tpu.memory_space<vmem>>, vector<128x1xf32>
    %8 = vector.broadcast %7 : vector<128x1xf32> to vector<128x128xf32>
    %9 = arith.mulf %6, %8 : vector<128x128xf32>
    %cst_7 = arith.constant dense<0.000000e+00> : vector<128xf32>
    %10 = vector.multi_reduction <add>, %9, %cst_7 [0] : vector<128x128xf32> to vector<128xf32>
    %11 = vector.shape_cast %10 : vector<128xf32> to vector<1x128xf32>
    %c0_8 = arith.constant 0 : index
    %c0_9 = arith.constant 0 : index
    %12 = vector.load %arg5[%c0_8, %c0_9] : memref<1x1xf32, #tpu.memory_space<vmem>>, vector<1x1xf32>
    %13 = vector.broadcast %12 : vector<1x1xf32> to vector<1x128xf32>
    %14 = arith.addf %11, %13 : vector<1x128xf32>
    %c0_10 = arith.constant 0 : index
    %c0_11 = arith.constant 0 : index
    %15 = vector.load %arg6[%c0_10, %c0_11] : memref<1x128xf32, #tpu.memory_space<vmem>>, vector<1x128xf32>
    tpu.vector_store %arg6[%c0_10, %c0_11], %14 {strides = array<i32>} : memref<1x128xf32, #tpu.memory_space<vmem>>, vector<1x128xf32>,
    return
  }
  func.func @transform_0(%arg0: i32) -> (i32, i32) {
    %c0_i32 = arith.constant 0 : i32
    %c0_i32_0 = arith.constant 0 : i32
    return %c0_i32, %arg0 : i32, i32
  }
  func.func @transform_1(%arg0: i32) -> (i32, i32) {
    %c0_i32 = arith.constant 0 : i32
    %c0_i32_0 = arith.constant 0 : i32
    %c0_i32_1 = arith.constant 0 : i32
    return %c0_i32, %c0_i32_0 : i32, i32
  }
  func.func @transform_2(%arg0: i32) -> (i32, i32) {
    %c0_i32 = arith.constant 0 : i32
    %c0_i32_0 = arith.constant 0 : i32
    %c0_i32_1 = arith.constant 0 : i32
    return %c0_i32, %c0_i32_0 : i32, i32
  }
  func.func @transform_3(%arg0: i32) -> (i32, i32) {
    %c0_i32 = arith.constant 0 : i32
    %c0_i32_0 = arith.constant 0 : i32
    %c0_i32_1 = arith.constant 0 : i32
    return %c0_i32, %c0_i32_0 : i32, i32
  }
  func.func @transform_4(%arg0: i32) -> (i32, i32) {
    %c0_i32 = arith.constant 0 : i32
    %c0_i32_0 = arith.constant 0 : i32
    %c0_i32_1 = arith.constant 0 : i32
    return %c0_i32, %c0_i32_0 : i32, i32
  }
  func.func @transform_5(%arg0: i32) -> (i32, i32) {
    %c0_i32 = arith.constant 0 : i32
    %c0_i32_0 = arith.constant 0 : i32
    return %c0_i32, %arg0 : i32, i32
  }
}

</mosaic_0001>

<llo_original>
// kernel: network_forward.1
$region0: #{network_forward.1}
  #allocation0 [shape = 'u32[]', space=smem, size = 0x4, offset = 0x4, fixed_abs, tag = 'smem constant byte address 0x4 - core index']
  #allocation1 [shape = 'u32[72,128]{1,0:T(1,128)}', space=vmem, size = 0x9000, scoped, tag = 'internal scratch']
  #allocation2 [shape = 'f32[1,1]{1,0:T(1,128)S(1)}', space=vmem, size = 0x200, scoped, tag = 'scoped memory for network_forward.1']
  %s0 = inlined_call_operand.vmem [shape: f32[8,384], index: 0, kind: input, shape index: {}]
  %s1 = inlined_call_operand.vmem [shape: f32[128,8], index: 1, kind: input, shape index: {}]
  %s2 = inlined_call_operand.vmem [shape: f32[128,1], index: 2, kind: input, shape index: {}]
  %s3 = inlined_call_operand.vmem [shape: f32[128,1], index: 3, kind: input, shape index: {}]
  %s4 = inlined_call_operand.<no memory space> [shape: f32[1,1], index: 4, kind: input, shape index: {}]
  %s5 = inlined_call_operand.vmem [shape: f32[1,384], index: 5, kind: output, shape index: {}]
  %s6 = sld [smem:[#allocation0]]
  $region53: #{network_forward.1} parent=0
    _
  %s8 = ssub.s32 1, %s6
  %s9 = scalar_select 0, %s8, %s6
  %v10 = vstv %s4
  %11 = vst [vmem:[#allocation2] sm:$0x1] %v10
  loop: start=0, step=1, limit=5
  $region2: #{network_forward.1} parent=0 // loop_pre_header
    _
  $region3: #{network_forward.1} parent=0 // loop_header
    %s13 = sphi 0, %s17
    %p14 = scmp.ge.s32.totalorder %s13, 5
    %s23 = sphi 0, %s25
    %s26 = sphi 0, %s23
    %s27 = sphi 0, %s26
    %s43 = sphi 0, %s27
    %s47 = sphi 0, %s47
    %s49 = sphi 0, %s47
    %s50 = sphi 0, %s49
    %s64 = sphi 0, %s50
    %s68 = sphi 0, %s68
    %s70 = sphi 0, %s68
    %s71 = sphi 0, %s70
    %s85 = sphi 0, %s71
    %s89 = sphi 0, %s89
    %s91 = sphi 0, %s89
    %s92 = sphi 0, %s91
    %s106 = sphi 0, %s92
    %s110 = sphi 0, %s110
    %s112 = sphi 0, %s110
    %s113 = sphi 0, %s112
    %s127 = sphi 0, %s113
    %s133 = sphi 0, %s135
    %s136 = sphi 0, %s133
    %s137 = sphi 0, %s136
    %s153 = sphi 0, %s137
  $region4: #{network_forward.1} parent=0 // loop_header_branch
    %16 = sbr.rel (%p14) target = $region8
  $region5: #{network_forward.1} parent=0 // loop_body
    %s18 = ssub.s32 %s13, 1
    %s19 = ssub.s32 %s13, 2
    %s20 = sadd.s32 %s13, 1
    %s21 = ssub.s32 %s13, %s20
    %p22 = scmp.eq.s32.totalorder %s21, 0
    %s24 = sadd.s32 %s23, 1
    %s25 = scalar_select %p22, %s23, %s24
    %p28 = pneg %p22
    %p29 = scmp.eq.s32.totalorder %s13, 2
    %p30 = por %p28, %p29
    %p31 = scmp.ne.s32.totalorder %s23, %s26
    %p32 = scmp.eq.s32.totalorder %s13, 0
    %p33 = por %p31, %p32
    %p34 = scmp.ne.s32.totalorder %s23, %s26
    %p35 = scmp.eq.s32.totalorder %s18, 2
    %p36 = por %p34, %p35
    %p37 = scmp.ne.s32.totalorder %s26, %s27
    %p38 = scmp.eq.s32.totalorder %s18, 0
    %p39 = por %p37, %p38
    %p40 = scmp.ne.s32.totalorder %s26, %s27
    %p41 = scmp.eq.s32.totalorder %s19, 2
    %p42 = por %p40, %p41
    %p44 = scmp.ne.s32.totalorder %s27, %s43
    %p45 = scmp.eq.s32.totalorder %s19, 0
    %p46 = por %p44, %p45
    %s48 = sadd.s32 %s47, 1
    %p51 = scmp.eq.s32.totalorder %s13, 2
    %p52 = scmp.ne.s32.totalorder %s47, %s49
    %p53 = scmp.eq.s32.totalorder %s13, 0
    %p54 = por %p52, %p53
    %p55 = scmp.ne.s32.totalorder %s47, %s49
    %p56 = scmp.eq.s32.totalorder %s18, 2
    %p57 = por %p55, %p56
    %p58 = scmp.ne.s32.totalorder %s49, %s50
    %p59 = scmp.eq.s32.totalorder %s18, 0
    %p60 = por %p58, %p59
    %p61 = scmp.ne.s32.totalorder %s49, %s50
    %p62 = scmp.eq.s32.totalorder %s19, 2
    %p63 = por %p61, %p62
    %p65 = scmp.ne.s32.totalorder %s50, %s64
    %p66 = scmp.eq.s32.totalorder %s19, 0
    %p67 = por %p65, %p66
    %s69 = sadd.s32 %s68, 1
    %p72 = scmp.eq.s32.totalorder %s13, 2
    %p73 = scmp.ne.s32.totalorder %s68, %s70
    %p74 = scmp.eq.s32.totalorder %s13, 0
    %p75 = por %p73, %p74
    %p76 = scmp.ne.s32.totalorder %s68, %s70
    %p77 = scmp.eq.s32.totalorder %s18, 2
    %p78 = por %p76, %p77
    %p79 = scmp.ne.s32.totalorder %s70, %s71
    %p80 = scmp.eq.s32.totalorder %s18, 0
    %p81 = por %p79, %p80
    %p82 = scmp.ne.s32.totalorder %s70, %s71
    %p83 = scmp.eq.s32.totalorder %s19, 2
    %p84 = por %p82, %p83
    %p86 = scmp.ne.s32.totalorder %s71, %s85
    %p87 = scmp.eq.s32.totalorder %s19, 0
    %p88 = por %p86, %p87
    %s90 = sadd.s32 %s89, 1
    %p93 = scmp.eq.s32.totalorder %s13, 2
    %p94 = scmp.ne.s32.totalorder %s89, %s91
    %p95 = scmp.eq.s32.totalorder %s13, 0
    %p96 = por %p94, %p95
    %p97 = scmp.ne.s32.totalorder %s89, %s91
    %p98 = scmp.eq.s32.totalorder %s18, 2
    %p99 = por %p97, %p98
    %p100 = scmp.ne.s32.totalorder %s91, %s92
    %p101 = scmp.eq.s32.totalorder %s18, 0
    %p102 = por %p100, %p101
    %p103 = scmp.ne.s32.totalorder %s91, %s92
    %p104 = scmp.eq.s32.totalorder %s19, 2
    %p105 = por %p103, %p104
    %p107 = scmp.ne.s32.totalorder %s92, %s106
    %p108 = scmp.eq.s32.totalorder %s19, 0
    %p109 = por %p107, %p108
    %s111 = sadd.s32 %s110, 1
    %p114 = scmp.eq.s32.totalorder %s13, 2
    %p115 = scmp.ne.s32.totalorder %s110, %s112
    %p116 = scmp.eq.s32.totalorder %s13, 0
    %p117 = por %p115, %p116
    %p118 = scmp.ne.s32.totalorder %s110, %s112
    %p119 = scmp.eq.s32.totalorder %s18, 2
    %p120 = por %p118, %p119
    %p121 = scmp.ne.s32.totalorder %s112, %s113
    %p122 = scmp.eq.s32.totalorder %s18, 0
    %p123 = por %p121, %p122
    %p124 = scmp.ne.s32.totalorder %s112, %s113
    %p125 = scmp.eq.s32.totalorder %s19, 2
    %p126 = por %p124, %p125
    %p128 = scmp.ne.s32.totalorder %s113, %s127
    %p129 = scmp.eq.s32.totalorder %s19, 0
    %p130 = por %p128, %p129
    %s131 = ssub.s32 %s13, %s20
    %p132 = scmp.eq.s32.totalorder %s131, 0
    %s134 = sadd.s32 %s133, 1
    %s135 = scalar_select %p132, %s133, %s134
    %p138 = pneg %p132
    %p139 = scmp.eq.s32.totalorder %s13, 2
    %p140 = por %p138, %p139
    %p141 = scmp.ne.s32.totalorder %s133, %s136
    %p142 = scmp.eq.s32.totalorder %s13, 0
    %p143 = por %p141, %p142
    %p144 = scmp.ne.s32.totalorder %s133, %s136
    %p145 = scmp.eq.s32.totalorder %s18, 2
    %p146 = por %p144, %p145
    %p147 = scmp.ne.s32.totalorder %s136, %s137
    %p148 = scmp.eq.s32.totalorder %s18, 0
    %p149 = por %p147, %p148
    %p150 = scmp.ne.s32.totalorder %s136, %s137
    %p151 = scmp.eq.s32.totalorder %s19, 2
    %p152 = por %p150, %p151
    %p154 = scmp.ne.s32.totalorder %s137, %s153
    %p155 = scmp.eq.s32.totalorder %s19, 0
    %p156 = por %p154, %p155
    %p157 = scmp.le.s32.totalorder 1, %s13
    %p158 = scmp.lt.s32.totalorder %s13, 4
    %p159 = pnand %p157, %p158
    %p160 = pneg %p159
    // Predicated region
    $region9: #{network_forward.1} parent=5 // pred_check
      _
    $region10: #{network_forward.1} parent=5 // pred_check_branch
      %162 = sbr.rel (%p159) target = $region12
    $region11: #{network_forward.1} parent=5 // pred_region
      %s163 = ssub.s32 %s13, 1
      // Predicated region
      $region13: #{network_forward.1} parent=11 // pred_check
        %p164 = pneg %p60
      $region14: #{network_forward.1} parent=11 // pred_check_branch
        %166 = sbr.rel (%p164) target = $region16
      $region15: #{network_forward.1} parent=11 // pred_region
        _
      $region16: #{network_forward.1} parent=11 // pred_fallthru
        _
      // Predicated region
      $region17: #{network_forward.1} parent=11 // pred_check
        %p167 = pneg %p81
      $region18: #{network_forward.1} parent=11 // pred_check_branch
        %169 = sbr.rel (%p167) target = $region20
      $region19: #{network_forward.1} parent=11 // pred_region
        _
      $region20: #{network_forward.1} parent=11 // pred_fallthru
        _
      // Predicated region
      $region21: #{network_forward.1} parent=11 // pred_check
        %p170 = pneg %p102
      $region22: #{network_forward.1} parent=11 // pred_check_branch
        %172 = sbr.rel (%p170) target = $region24
      $region23: #{network_forward.1} parent=11 // pred_region
        _
      $region24: #{network_forward.1} parent=11 // pred_fallthru
        _
      // Predicated region
      $region25: #{network_forward.1} parent=11 // pred_check
        %p173 = pneg %p123
      $region26: #{network_forward.1} parent=11 // pred_check_branch
        %175 = sbr.rel (%p173) target = $region28
      $region27: #{network_forward.1} parent=11 // pred_region
        _
      $region28: #{network_forward.1} parent=11 // pred_fallthru
        _
    $region12: #{network_forward.1} parent=5 // pred_fallthru
      _
    %p176 = scmp.lt.s32.totalorder %s13, 3
    // Predicated region
    $region29: #{network_forward.1} parent=5 // pred_check
      %p177 = pneg %p176
    $region30: #{network_forward.1} parent=5 // pred_check_branch
      %179 = sbr.rel (%p177) target = $region32
    $region31: #{network_forward.1} parent=5 // pred_region
      // Predicated region
      $region33: #{network_forward.1} parent=31 // pred_check
        %p180 = pneg %p33
      $region34: #{network_forward.1} parent=31 // pred_check_branch
        %182 = sbr.rel (%p180) target = $region36
      $region35: #{network_forward.1} parent=31 // pred_region
        %p183 = scmp.lt.s32.totalorder %s13, 2
        %s184 = scalar_select %p183, %s13, 2
        %s185 = smul.addr %s184, 8
        %s186 = scalar_lea.vmem %s0, %s185
      $region36: #{network_forward.1} parent=31 // pred_fallthru
        _
    $region32: #{network_forward.1} parent=5 // pred_fallthru
      _
    %p187 = scmp.le.s32.totalorder 1, %s13
    %p188 = scmp.lt.s32.totalorder %s13, 4
    %p189 = pnand %p187, %p188
    %p190 = pneg %p189
    // Predicated region
    $region37: #{network_forward.1} parent=5 // pred_check
      _
    $region38: #{network_forward.1} parent=5 // pred_check_branch
      %192 = sbr.rel (%p189) target = $region40
    $region39: #{network_forward.1} parent=5 // pred_region
      %s193 = ssub.s32 %s13, 1
      %p194 = scmp.lt.s32.totalorder %s18, 2
      %s195 = scalar_select %p194, %s18, 2
      %s196 = smul.addr %s195, 8
      %s197 = scalar_lea.vmem %s0, %s196
      %p198 = pneg %p39
      %p199 = pneg %p36
      %p200 = pneg %p60
      %p201 = pneg %p57
      %p202 = pneg %p81
      %p203 = pneg %p78
      %p204 = pneg %p102
      %p205 = pneg %p99
      %p206 = pneg %p123
      %p207 = pneg %p120
      %p208 = pneg %p149
      %p209 = pneg %p146
      %p210 = scmp.lt.s32.totalorder %s18, 2
      %s211 = scalar_select %p210, %s18, 2
      %s212 = scalar_lea.vmem %s5, %s211
      %p213 = scmp.lt.s32.totalorder %s18, 2
      %s214 = scalar_select %p213, %s18, 2
      %s215 = smul.addr %s214, 8
      %s216 = scalar_lea.vmem %s0, %s215
      %p217 = scmp.lt.s32.totalorder %s18, 2
      %s218 = scalar_select %p217, %s18, 2
      %s219 = scalar_lea.vmem %s5, %s218
      %v220 = vld [vmem:[%s1] sm:$0xff]
      %v221 = vld [vmem:[%s1 + $0x8] sm:$0xff]
      %v222 = vld [vmem:[%s1 + $0x10] sm:$0xff]
      %v223 = vld [vmem:[%s1 + $0x18] sm:$0xff]
      %v224 = vld [vmem:[%s1 + $0x20] sm:$0xff]
      %v225 = vld [vmem:[%s1 + $0x28] sm:$0xff]
      %v226 = vld [vmem:[%s1 + $0x30] sm:$0xff]
      %v227 = vld [vmem:[%s1 + $0x38] sm:$0xff]
      %v228 = vld [vmem:[%s1 + $0x40] sm:$0xff]
      %v229 = vld [vmem:[%s1 + $0x48] sm:$0xff]
      %v230 = vld [vmem:[%s1 + $0x50] sm:$0xff]
      %v231 = vld [vmem:[%s1 + $0x58] sm:$0xff]
      %v232 = vld [vmem:[%s1 + $0x60] sm:$0xff]
      %v233 = vld [vmem:[%s1 + $0x68] sm:$0xff]
      %v234 = vld [vmem:[%s1 + $0x70] sm:$0xff]
      %v235 = vld [vmem:[%s1 + $0x78] sm:$0xff]
      %v236 = vld [vmem:[%s216] sm:$0xff]
      %v237 = vld [vmem:[%s2] sm:$0xff]
      %v238 = vld [vmem:[%s2 + $0x8] sm:$0xff]
      %v239 = vld [vmem:[%s2 + $0x10] sm:$0xff]
      %v240 = vld [vmem:[%s2 + $0x18] sm:$0xff]
      %v241 = vld [vmem:[%s2 + $0x20] sm:$0xff]
      %v242 = vld [vmem:[%s2 + $0x28] sm:$0xff]
      %v243 = vld [vmem:[%s2 + $0x30] sm:$0xff]
      %v244 = vld [vmem:[%s2 + $0x38] sm:$0xff]
      %v245 = vld [vmem:[%s2 + $0x40] sm:$0xff]
      %v246 = vld [vmem:[%s2 + $0x48] sm:$0xff]
      %v247 = vld [vmem:[%s2 + $0x50] sm:$0xff]
      %v248 = vld [vmem:[%s2 + $0x58] sm:$0xff]
      %v249 = vld [vmem:[%s2 + $0x60] sm:$0xff]
      %v250 = vld [vmem:[%s2 + $0x68] sm:$0xff]
      %v251 = vld [vmem:[%s2 + $0x70] sm:$0xff]
      %v252 = vld [vmem:[%s2 + $0x78] sm:$0xff]
      %254 = vset.pattern.permute.xlu0 0
      %255 = vperm.xlu0 %254, %v237
      %v256 = vpop.permute.xlu0 %255
      %259 = vset.pattern.permute.xlu0 0
      %260 = vperm.xlu0 %259, %v238
      %v261 = vpop.permute.xlu0 %260
      %264 = vset.pattern.permute.xlu0 0
      %265 = vperm.xlu0 %264, %v239
      %v266 = vpop.permute.xlu0 %265
      %269 = vset.pattern.permute.xlu0 0
      %270 = vperm.xlu0 %269, %v240
      %v271 = vpop.permute.xlu0 %270
      %274 = vset.pattern.permute.xlu0 0
      %275 = vperm.xlu0 %274, %v241
      %v276 = vpop.permute.xlu0 %275
      %279 = vset.pattern.permute.xlu0 0
      %280 = vperm.xlu0 %279, %v242
      %v281 = vpop.permute.xlu0 %280
      %284 = vset.pattern.permute.xlu0 0
      %285 = vperm.xlu0 %284, %v243
      %v286 = vpop.permute.xlu0 %285
      %289 = vset.pattern.permute.xlu0 0
      %290 = vperm.xlu0 %289, %v244
      %v291 = vpop.permute.xlu0 %290
      %294 = vset.pattern.permute.xlu0 0
      %295 = vperm.xlu0 %294, %v245
      %v296 = vpop.permute.xlu0 %295
      %299 = vset.pattern.permute.xlu0 0
      %300 = vperm.xlu0 %299, %v246
      %v301 = vpop.permute.xlu0 %300
      %304 = vset.pattern.permute.xlu0 0
      %305 = vperm.xlu0 %304, %v247
      %v306 = vpop.permute.xlu0 %305
      %309 = vset.pattern.permute.xlu0 0
      %310 = vperm.xlu0 %309, %v248
      %v311 = vpop.permute.xlu0 %310
      %314 = vset.pattern.permute.xlu0 0
      %315 = vperm.xlu0 %314, %v249
      %v316 = vpop.permute.xlu0 %315
      %319 = vset.pattern.permute.xlu0 0
      %320 = vperm.xlu0 %319, %v250
      %v321 = vpop.permute.xlu0 %320
      %324 = vset.pattern.permute.xlu0 0
      %325 = vperm.xlu0 %324, %v251
      %v326 = vpop.permute.xlu0 %325
      %329 = vset.pattern.permute.xlu0 0
      %330 = vperm.xlu0 %329, %v252
      %v331 = vpop.permute.xlu0 %330
      %vm333 = vcmask 64512
      %v335 = vsel %vm333, %v220, 0
      %v338 = vsel %vm333, %v221, 0
      %v341 = vsel %vm333, %v222, 0
      %v344 = vsel %vm333, %v223, 0
      %v347 = vsel %vm333, %v224, 0
      %v350 = vsel %vm333, %v225, 0
      %v353 = vsel %vm333, %v226, 0
      %v356 = vsel %vm333, %v227, 0
      %v359 = vsel %vm333, %v228, 0
      %v362 = vsel %vm333, %v229, 0
      %v365 = vsel %vm333, %v230, 0
      %v368 = vsel %vm333, %v231, 0
      %v371 = vsel %vm333, %v232, 0
      %v374 = vsel %vm333, %v233, 0
      %v377 = vsel %vm333, %v234, 0
      %v380 = vsel %vm333, %v235, 0
      %382 = vmatpush.msra.mxu0 0.0
      %383 = vmatpush.msra.mxu0 0.0
      %384 = vmatpush.msra.mxu0 0.0
      %385 = vmatpush.msra.mxu0 0.0
      %386 = vmatpush.msra.mxu0 0.0
      %387 = vmatpush.msra.mxu0 0.0
      %388 = vmatpush.msra.mxu0 0.0
      %389 = vmatpush.msra.mxu0 0.0
      %390 = vmatpush.msra.mxu0 0.0
      %391 = vmatpush.msra.mxu0 0.0
      %392 = vmatpush.msra.mxu0 0.0
      %393 = vmatpush.msra.mxu0 0.0
      %394 = vmatpush.msra.mxu0 0.0
      %395 = vmatpush.msra.mxu0 0.0
      %396 = vmatpush.msra.mxu0 0.0
      %397 = vmatpush.msra.mxu0 %v236
      %398 = vmatmul.f32.gmra.mxu0 %v335
      %v399 = vpop.f32.mrf.mxu0
      %v400 = vadd.f32 %v256, %v399
      %401 = vmatmul.f32.gmra.mxu0 %v338
      %v402 = vpop.f32.mrf.mxu0
      %v403 = vadd.f32 %v261, %v402
      %404 = vmatmul.f32.gmra.mxu0 %v341
      %v405 = vpop.f32.mrf.mxu0
      %v406 = vadd.f32 %v266, %v405
      %407 = vmatmul.f32.gmra.mxu0 %v344
      %v408 = vpop.f32.mrf.mxu0
      %v409 = vadd.f32 %v271, %v408
      %410 = vmatmul.f32.gmra.mxu0 %v347
      %v411 = vpop.f32.mrf.mxu0
      %v412 = vadd.f32 %v276, %v411
      %413 = vmatmul.f32.gmra.mxu0 %v350
      %v414 = vpop.f32.mrf.mxu0
      %v415 = vadd.f32 %v281, %v414
      %416 = vmatmul.f32.gmra.mxu0 %v353
      %v417 = vpop.f32.mrf.mxu0
      %v418 = vadd.f32 %v286, %v417
      %419 = vmatmul.f32.gmra.mxu0 %v356
      %v420 = vpop.f32.mrf.mxu0
      %v421 = vadd.f32 %v291, %v420
      %422 = vmatmul.f32.gmra.mxu0 %v359
      %v423 = vpop.f32.mrf.mxu0
      %v424 = vadd.f32 %v296, %v423
      %425 = vmatmul.f32.gmra.mxu0 %v362
      %v426 = vpop.f32.mrf.mxu0
      %v427 = vadd.f32 %v301, %v426
      %428 = vmatmul.f32.gmra.mxu0 %v365
      %v429 = vpop.f32.mrf.mxu0
      %v430 = vadd.f32 %v306, %v429
      %431 = vmatmul.f32.gmra.mxu0 %v368
      %v432 = vpop.f32.mrf.mxu0
      %v433 = vadd.f32 %v311, %v432
      %434 = vmatmul.f32.gmra.mxu0 %v371
      %v435 = vpop.f32.mrf.mxu0
      %v436 = vadd.f32 %v316, %v435
      %437 = vmatmul.f32.gmra.mxu0 %v374
      %v438 = vpop.f32.mrf.mxu0
      %v439 = vadd.f32 %v321, %v438
      %440 = vmatmul.f32.gmra.mxu0 %v377
      %v441 = vpop.f32.mrf.mxu0
      %v442 = vadd.f32 %v326, %v441
      %443 = vmatmul.f32.gmra.mxu0 %v380
      %v444 = vpop.f32.mrf.mxu0
      %v445 = vadd.f32 %v331, %v444
      %446 = vdwg.mxu0
      %v447 = vand.u32 2147483647, %v400
      %vm448 = vcmp.le.f32.partialorder %v447, 0.7853982
      %vm449 = vcmp.lt.s32.totalorder %v400, 0
      %v450 = vand.u32 %v400, 2139095040
      %v451 = vshrl.u32 %v450, 23
      %v452 = vsub.s32 %v451, 127
      %v453 = vand.u32 2147483647, %v400
      %v454 = vand.u32 %v453, 8388607
      %v455 = vor.u32 %v454, 8388608
      %v456 = vsub.s32 0, %v455
      %v457 = vadd.s32 %v452, 1
      %vm458 = vcmp.gt.s32.totalorder %v457, 0
      %v459 = vsel %vm458, %v457, 0
      %v460 = vshrl.u32 %v459, 5
      %v461 = vand.u32 %v459, 31
      %v462 = vsub.s32 32, %v461
      %v463 = vshrl.u32 683565275, %v462
      %v464 = vshll.u32 683565275, %v461
      %v465 = vshrl.u32 2475754826, %v462
      %v466 = vor.u32 %v464, %v465
      %v467 = vshll.u32 2475754826, %v461
      %v468 = vshrl.u32 2131351028, %v462
      %v469 = vor.u32 %v467, %v468
      %v470 = vshll.u32 2131351028, %v461
      %v471 = vshrl.u32 2102212464, %v462
      %v472 = vor.u32 %v470, %v471
      %v473 = vshll.u32 2102212464, %v461
      %v474 = vshrl.u32 920167782, %v462
      %v475 = vor.u32 %v473, %v474
      %v476 = vshll.u32 920167782, %v461
      %v477 = vshrl.u32 1326507024, %v462
      %v478 = vor.u32 %v476, %v477
      %vm479 = vcmp.lt.s32.totalorder %v460, 1
      %vm480 = vcmp.lt.s32.totalorder %v460, 2
      %vm481 = vcmp.lt.s32.totalorder %v460, 3
      %vm482 = vcmp.lt.s32.totalorder %v460, 4
      %v483 = vsel %vm479, %v463, %v466
      %v484 = vsel %vm482, %v472, 2102212464
      %v485 = vsel %vm481, %v469, %v484
      %v486 = vsel %vm480, %v483, %v485
      %v487 = vsel %vm479, %v466, %v469
      %v488 = vsel %vm482, %v475, 920167782
      %v489 = vsel %vm481, %v472, %v488
      %v490 = vsel %vm480, %v487, %v489
      %v491 = vsel %vm479, %v469, %v472
      %v492 = vsel %vm482, %v478, 1326507024
      %v493 = vsel %vm481, %v475, %v492
      %v494 = vsel %vm480, %v491, %v493
      %v495 = vshll.u32 %v455, 8
      %v496 = vand.u32 %v495, 65535
      %v497 = vshrl.u32 %v495, 16
      %v498 = vand.u32 %v494, 65535
      %v499 = vshrl.u32 %v494, 16
      %v500 = vmul.u32 %v496, %v498
      %v501 = vmul.u32 %v496, %v499
      %v502 = vmul.u32 %v497, %v498
      %v503 = vmul.u32 %v497, %v499
      %v504 = vshll.u32 %v501, 16
      %v505 = vshrl.u32 %v501, 16
      %v506 = vshll.u32 %v502, 16
      %v507 = vshrl.u32 %v502, 16
      %vm508 = vc.u32 %v500, %v504
      %v509 = vsel %vm508, 1, 0
      %v510 = vadd.s32 %v500, %v504
      %v511 = vadd.s32 %v503, %v509
      %vm512 = vc.u32 %v510, %v506
      %v513 = vsel %vm512, 1, 0
      %v514 = vadd.s32 %v510, %v506
      %v515 = vadd.s32 %v511, %v513
      %v516 = vadd.s32 %v515, %v505
      %v517 = vadd.s32 %v516, %v507
      %v518 = vand.u32 %v495, 65535
      %v519 = vshrl.u32 %v495, 16
      %v520 = vand.u32 %v490, 65535
      %v521 = vshrl.u32 %v490, 16
      %v522 = vmul.u32 %v518, %v520
      %v523 = vmul.u32 %v518, %v521
      %v524 = vmul.u32 %v519, %v520
      %v525 = vmul.u32 %v519, %v521
      %v526 = vshll.u32 %v523, 16
      %v527 = vshrl.u32 %v523, 16
      %v528 = vshll.u32 %v524, 16
      %v529 = vshrl.u32 %v524, 16
      %vm530 = vc.u32 %v522, %v526
      %v531 = vsel %vm530, 1, 0
      %v532 = vadd.s32 %v522, %v526
      %v533 = vadd.s32 %v525, %v531
      %vm534 = vc.u32 %v532, %v528
      %v535 = vsel %vm534, 1, 0
      %v536 = vadd.s32 %v532, %v528
      %v537 = vadd.s32 %v533, %v535
      %v538 = vadd.s32 %v537, %v527
      %v539 = vadd.s32 %v538, %v529
      %v540 = vmul.u32 %v495, %v486
      %v541 = vadd.s32 %v517, %v536
      %vm542 = vc.u32 %v517, %v536
      %v543 = vadd.s32 %v539, 1
      %v544 = vsel %vm542, %v543, %v539
      %v545 = vadd.s32 %v540, %v544
      %v546 = vadd.s32 %v545, 536870912
      %v547 = vshrl.u32 %v546, 30
      %v548 = vshll.u32 %v547, 30
      %v549 = vsub.s32 %v545, %v548
      %vm550 = vcmp.lt.s32.totalorder %v549, 0
      %v551 = vsub.s32 0, %v549
      %v552 = vsel %vm550, %v551, %v549
      %v553 = vclz %v552
      %v554 = vsub.s32 %v553, 2
      %vm555 = vcmp.gt.s32.totalorder 0, %v554
      %v556 = vsel %vm555, 0, %v554
      %v557 = vsub.s32 32, %v556
      %v558 = vshll.u32 %v549, %v556
      %v559 = vshrl.u32 %v541, %v557
      %v560 = vor.u32 %v558, %v559
      %v561 = vsub.s32 4294967266, %v556
      %v562 = vadd.s32 %v561, 127
      %v563 = vshll.u32 %v562, 23
      %v564 = vor.u32 4788187, %v563
      %v565 = vand.u32 2147483647, %v564
      %v567 = vcvt.s32.f32 %v560
      %v568 = vmul.f32 %v567, %v565
      %v569 = vxor.u32 %v568, 2147483648
      %v570 = vsel %vm449, %v569, %v568
      %v571 = vsub.s32 4, %v547
      %v572 = vsel %vm449, %v571, %v547
      %v573 = vsel %vm448, %v400, %v570
      %v574 = vsel %vm448, 0, %v572
      %v575 = vmul.f32 %v573, %v573
      %v576 = vmul.f32 %v575, -0.001358992
      %v577 = vadd.f32 %v576, 0.041655596
      %v578 = vmul.f32 %v575, %v577
      %v579 = vadd.f32 %v578, -0.4999988
      %v580 = vmul.f32 %v575, %v579
      %v581 = vadd.f32 1.0, %v580
      %v582 = vmul.f32 %v573, %v573
      %v583 = vmul.f32 %v582, -0.00019511016
      %v584 = vadd.f32 %v583, 0.008332121
      %v585 = vmul.f32 %v582, %v584
      %v586 = vadd.f32 %v585, -0.16666654
      %v587 = vmul.f32 %v582, %v586
      %v588 = vadd.f32 %v587, 1.0
      %v589 = vmul.f32 %v588, %v573
      %vm590 = vweird.f32 %v400
      %v591 = vadd.s32 %v574, 3
      %v592 = vand.u32 %v591, 3
      %vm593 = vcmp.lt.s32.totalorder %v592, 2
      %vm594 = vcmp.eq.s32.totalorder %v592, 0
      %v595 = vxor.u32 %v589, 2147483648
      %v596 = vsel %vm594, %v581, %v595
      %vm597 = vcmp.eq.s32.totalorder %v592, 2
      %v598 = vxor.u32 %v581, 2147483648
      %v599 = vsel %vm597, %v598, %v589
      %v600 = vsel %vm593, %v596, %v599
      %v601 = vsel %vm590, nan, %v600
      %v602 = vand.u32 2147483647, %v403
      %vm603 = vcmp.le.f32.partialorder %v602, 0.7853982
      %vm604 = vcmp.lt.s32.totalorder %v403, 0
      %v605 = vand.u32 %v403, 2139095040
      %v606 = vshrl.u32 %v605, 23
      %v607 = vsub.s32 %v606, 127
      %v608 = vand.u32 2147483647, %v403
      %v609 = vand.u32 %v608, 8388607
      %v610 = vor.u32 %v609, 8388608
      %v611 = vsub.s32 0, %v610
      %v612 = vadd.s32 %v607, 1
      %vm613 = vcmp.gt.s32.totalorder %v612, 0
      %v614 = vsel %vm613, %v612, 0
      %v615 = vshrl.u32 %v614, 5
      %v616 = vand.u32 %v614, 31
      %v617 = vsub.s32 32, %v616
      %v618 = vshrl.u32 683565275, %v617
      %v619 = vshll.u32 683565275, %v616
      %v620 = vshrl.u32 2475754826, %v617
      %v621 = vor.u32 %v619, %v620
      %v622 = vshll.u32 2475754826, %v616
      %v623 = vshrl.u32 2131351028, %v617
      %v624 = vor.u32 %v622, %v623
      %v625 = vshll.u32 2131351028, %v616
      %v626 = vshrl.u32 2102212464, %v617
      %v627 = vor.u32 %v625, %v626
      %v628 = vshll.u32 2102212464, %v616
      %v629 = vshrl.u32 920167782, %v617
      %v630 = vor.u32 %v628, %v629
      %v631 = vshll.u32 920167782, %v616
      %v632 = vshrl.u32 1326507024, %v617
      %v633 = vor.u32 %v631, %v632
      %vm634 = vcmp.lt.s32.totalorder %v615, 1
      %vm635 = vcmp.lt.s32.totalorder %v615, 2
      %vm636 = vcmp.lt.s32.totalorder %v615, 3
      %vm637 = vcmp.lt.s32.totalorder %v615, 4
      %v638 = vsel %vm634, %v618, %v621
      %v639 = vsel %vm637, %v627, 2102212464
      %v640 = vsel %vm636, %v624, %v639
      %v641 = vsel %vm635, %v638, %v640
      %v642 = vsel %vm634, %v621, %v624
      %v643 = vsel %vm637, %v630, 920167782
      %v644 = vsel %vm636, %v627, %v643
      %v645 = vsel %vm635, %v642, %v644
      %v646 = vsel %vm634, %v624, %v627
      %v647 = vsel %vm637, %v633, 1326507024
      %v648 = vsel %vm636, %v630, %v647
      %v649 = vsel %vm635, %v646, %v648
      %v650 = vshll.u32 %v610, 8
      %v651 = vand.u32 %v650, 65535
      %v652 = vshrl.u32 %v650, 16
      %v653 = vand.u32 %v649, 65535
      %v654 = vshrl.u32 %v649, 16
      %v655 = vmul.u32 %v651, %v653
      %v656 = vmul.u32 %v651, %v654
      %v657 = vmul.u32 %v652, %v653
      %v658 = vmul.u32 %v652, %v654
      %v659 = vshll.u32 %v656, 16
      %v660 = vshrl.u32 %v656, 16
      %v661 = vshll.u32 %v657, 16
      %v662 = vshrl.u32 %v657, 16
      %vm663 = vc.u32 %v655, %v659
      %v664 = vsel %vm663, 1, 0
      %v665 = vadd.s32 %v655, %v659
      %v666 = vadd.s32 %v658, %v664
      %vm667 = vc.u32 %v665, %v661
      %v668 = vsel %vm667, 1, 0
      %v669 = vadd.s32 %v665, %v661
      %v670 = vadd.s32 %v666, %v668
      %v671 = vadd.s32 %v670, %v660
      %v672 = vadd.s32 %v671, %v662
      %v673 = vand.u32 %v650, 65535
      %v674 = vshrl.u32 %v650, 16
      %v675 = vand.u32 %v645, 65535
      %v676 = vshrl.u32 %v645, 16
      %v677 = vmul.u32 %v673, %v675
      %v678 = vmul.u32 %v673, %v676
      %v679 = vmul.u32 %v674, %v675
      %v680 = vmul.u32 %v674, %v676
      %v681 = vshll.u32 %v678, 16
      %v682 = vshrl.u32 %v678, 16
      %v683 = vshll.u32 %v679, 16
      %v684 = vshrl.u32 %v679, 16
      %vm685 = vc.u32 %v677, %v681
      %v686 = vsel %vm685, 1, 0
      %v687 = vadd.s32 %v677, %v681
      %v688 = vadd.s32 %v680, %v686
      %vm689 = vc.u32 %v687, %v683
      %v690 = vsel %vm689, 1, 0
      %v691 = vadd.s32 %v687, %v683
      %v692 = vadd.s32 %v688, %v690
      %v693 = vadd.s32 %v692, %v682
      %v694 = vadd.s32 %v693, %v684
      %v695 = vmul.u32 %v650, %v641
      %v696 = vadd.s32 %v672, %v691
      %vm697 = vc.u32 %v672, %v691
      %v698 = vadd.s32 %v694, 1
      %v699 = vsel %vm697, %v698, %v694
      %v700 = vadd.s32 %v695, %v699
      %v701 = vadd.s32 %v700, 536870912
      %v702 = vshrl.u32 %v701, 30
      %v703 = vshll.u32 %v702, 30
      %v704 = vsub.s32 %v700, %v703
      %vm705 = vcmp.lt.s32.totalorder %v704, 0
      %v706 = vsub.s32 0, %v704
      %v707 = vsel %vm705, %v706, %v704
      %v708 = vclz %v707
      %v709 = vsub.s32 %v708, 2
      %vm710 = vcmp.gt.s32.totalorder 0, %v709
      %v711 = vsel %vm710, 0, %v709
      %v712 = vsub.s32 32, %v711
      %v713 = vshll.u32 %v704, %v711
      %v714 = vshrl.u32 %v696, %v712
      %v715 = vor.u32 %v713, %v714
      %v716 = vsub.s32 4294967266, %v711
      %v717 = vadd.s32 %v716, 127
      %v718 = vshll.u32 %v717, 23
      %v719 = vor.u32 4788187, %v718
      %v720 = vand.u32 2147483647, %v719
      %v722 = vcvt.s32.f32 %v715
      %v723 = vmul.f32 %v722, %v720
      %v724 = vxor.u32 %v723, 2147483648
      %v725 = vsel %vm604, %v724, %v723
      %v726 = vsub.s32 4, %v702
      %v727 = vsel %vm604, %v726, %v702
      %v728 = vsel %vm603, %v403, %v725
      %v729 = vsel %vm603, 0, %v727
      %v730 = vmul.f32 %v728, %v728
      %v731 = vmul.f32 %v730, -0.001358992
      %v732 = vadd.f32 %v731, 0.041655596
      %v733 = vmul.f32 %v730, %v732
      %v734 = vadd.f32 %v733, -0.4999988
      %v735 = vmul.f32 %v730, %v734
      %v736 = vadd.f32 1.0, %v735
      %v737 = vmul.f32 %v728, %v728
      %v738 = vmul.f32 %v737, -0.00019511016
      %v739 = vadd.f32 %v738, 0.008332121
      %v740 = vmul.f32 %v737, %v739
      %v741 = vadd.f32 %v740, -0.16666654
      %v742 = vmul.f32 %v737, %v741
      %v743 = vadd.f32 %v742, 1.0
      %v744 = vmul.f32 %v743, %v728
      %vm745 = vweird.f32 %v403
      %v746 = vadd.s32 %v729, 3
      %v747 = vand.u32 %v746, 3
      %vm748 = vcmp.lt.s32.totalorder %v747, 2
      %vm749 = vcmp.eq.s32.totalorder %v747, 0
      %v750 = vxor.u32 %v744, 2147483648
      %v751 = vsel %vm749, %v736, %v750
      %vm752 = vcmp.eq.s32.totalorder %v747, 2
      %v753 = vxor.u32 %v736, 2147483648
      %v754 = vsel %vm752, %v753, %v744
      %v755 = vsel %vm748, %v751, %v754
      %v756 = vsel %vm745, nan, %v755
      %v757 = vand.u32 2147483647, %v406
      %vm758 = vcmp.le.f32.partialorder %v757, 0.7853982
      %vm759 = vcmp.lt.s32.totalorder %v406, 0
      %v760 = vand.u32 %v406, 2139095040
      %v761 = vshrl.u32 %v760, 23
      %v762 = vsub.s32 %v761, 127
      %v763 = vand.u32 2147483647, %v406
      %v764 = vand.u32 %v763, 8388607
      %v765 = vor.u32 %v764, 8388608
      %v766 = vsub.s32 0, %v765
      %v767 = vadd.s32 %v762, 1
      %vm768 = vcmp.gt.s32.totalorder %v767, 0
      %v769 = vsel %vm768, %v767, 0
      %v770 = vshrl.u32 %v769, 5
      %v771 = vand.u32 %v769, 31
      %v772 = vsub.s32 32, %v771
      %v773 = vshrl.u32 683565275, %v772
      %v774 = vshll.u32 683565275, %v771
      %v775 = vshrl.u32 2475754826, %v772
      %v776 = vor.u32 %v774, %v775
      %v777 = vshll.u32 2475754826, %v771
      %v778 = vshrl.u32 2131351028, %v772
      %v779 = vor.u32 %v777, %v778
      %v780 = vshll.u32 2131351028, %v771
      %v781 = vshrl.u32 2102212464, %v772
      %v782 = vor.u32 %v780, %v781
      %v783 = vshll.u32 2102212464, %v771
      %v784 = vshrl.u32 920167782, %v772
      %v785 = vor.u32 %v783, %v784
      %v786 = vshll.u32 920167782, %v771
      %v787 = vshrl.u32 1326507024, %v772
      %v788 = vor.u32 %v786, %v787
      %vm789 = vcmp.lt.s32.totalorder %v770, 1
      %vm790 = vcmp.lt.s32.totalorder %v770, 2
      %vm791 = vcmp.lt.s32.totalorder %v770, 3
      %vm792 = vcmp.lt.s32.totalorder %v770, 4
      %v793 = vsel %vm789, %v773, %v776
      %v794 = vsel %vm792, %v782, 2102212464
      %v795 = vsel %vm791, %v779, %v794
      %v796 = vsel %vm790, %v793, %v795
      %v797 = vsel %vm789, %v776, %v779
      %v798 = vsel %vm792, %v785, 920167782
      %v799 = vsel %vm791, %v782, %v798
      %v800 = vsel %vm790, %v797, %v799
      %v801 = vsel %vm789, %v779, %v782
      %v802 = vsel %vm792, %v788, 1326507024
      %v803 = vsel %vm791, %v785, %v802
      %v804 = vsel %vm790, %v801, %v803
      %v805 = vshll.u32 %v765, 8
      %v806 = vand.u32 %v805, 65535
      %v807 = vshrl.u32 %v805, 16
      %v808 = vand.u32 %v804, 65535
      %v809 = vshrl.u32 %v804, 16
      %v810 = vmul.u32 %v806, %v808
      %v811 = vmul.u32 %v806, %v809
      %v812 = vmul.u32 %v807, %v808
      %v813 = vmul.u32 %v807, %v809
      %v814 = vshll.u32 %v811, 16
      %v815 = vshrl.u32 %v811, 16
      %v816 = vshll.u32 %v812, 16
      %v817 = vshrl.u32 %v812, 16
      %vm818 = vc.u32 %v810, %v814
      %v819 = vsel %vm818, 1, 0
      %v820 = vadd.s32 %v810, %v814
      %v821 = vadd.s32 %v813, %v819
      %vm822 = vc.u32 %v820, %v816
      %v823 = vsel %vm822, 1, 0
      %v824 = vadd.s32 %v820, %v816
      %v825 = vadd.s32 %v821, %v823
      %v826 = vadd.s32 %v825, %v815
      %v827 = vadd.s32 %v826, %v817
      %v828 = vand.u32 %v805, 65535
      %v829 = vshrl.u32 %v805, 16
      %v830 = vand.u32 %v800, 65535
      %v831 = vshrl.u32 %v800, 16
      %v832 = vmul.u32 %v828, %v830
      %v833 = vmul.u32 %v828, %v831
      %v834 = vmul.u32 %v829, %v830
      %v835 = vmul.u32 %v829, %v831
      %v836 = vshll.u32 %v833, 16
      %v837 = vshrl.u32 %v833, 16
      %v838 = vshll.u32 %v834, 16
      %v839 = vshrl.u32 %v834, 16
      %vm840 = vc.u32 %v832, %v836
      %v841 = vsel %vm840, 1, 0
      %v842 = vadd.s32 %v832, %v836
      %v843 = vadd.s32 %v835, %v841
      %vm844 = vc.u32 %v842, %v838
      %v845 = vsel %vm844, 1, 0
      %v846 = vadd.s32 %v842, %v838
      %v847 = vadd.s32 %v843, %v845
      %v848 = vadd.s32 %v847, %v837
      %v849 = vadd.s32 %v848, %v839
      %v850 = vmul.u32 %v805, %v796
      %v851 = vadd.s32 %v827, %v846
      %vm852 = vc.u32 %v827, %v846
      %v853 = vadd.s32 %v849, 1
      %v854 = vsel %vm852, %v853, %v849
      %v855 = vadd.s32 %v850, %v854
      %v856 = vadd.s32 %v855, 536870912
      %v857 = vshrl.u32 %v856, 30
      %v858 = vshll.u32 %v857, 30
      %v859 = vsub.s32 %v855, %v858
      %vm860 = vcmp.lt.s32.totalorder %v859, 0
      %v861 = vsub.s32 0, %v859
      %v862 = vsel %vm860, %v861, %v859
      %v863 = vclz %v862
      %v864 = vsub.s32 %v863, 2
      %vm865 = vcmp.gt.s32.totalorder 0, %v864
      %v866 = vsel %vm865, 0, %v864
      %v867 = vsub.s32 32, %v866
      %v868 = vshll.u32 %v859, %v866
      %v869 = vshrl.u32 %v851, %v867
      %v870 = vor.u32 %v868, %v869
      %v871 = vsub.s32 4294967266, %v866
      %v872 = vadd.s32 %v871, 127
      %v873 = vshll.u32 %v872, 23
      %v874 = vor.u32 4788187, %v873
      %v875 = vand.u32 2147483647, %v874
      %v877 = vcvt.s32.f32 %v870
      %v878 = vmul.f32 %v877, %v875
      %v879 = vxor.u32 %v878, 2147483648
      %v880 = vsel %vm759, %v879, %v878
      %v881 = vsub.s32 4, %v857
      %v882 = vsel %vm759, %v881, %v857
      %v883 = vsel %vm758, %v406, %v880
      %v884 = vsel %vm758, 0, %v882
      %v885 = vmul.f32 %v883, %v883
      %v886 = vmul.f32 %v885, -0.001358992
      %v887 = vadd.f32 %v886, 0.041655596
      %v888 = vmul.f32 %v885, %v887
      %v889 = vadd.f32 %v888, -0.4999988
      %v890 = vmul.f32 %v885, %v889
      %v891 = vadd.f32 1.0, %v890
      %v892 = vmul.f32 %v883, %v883
      %v893 = vmul.f32 %v892, -0.00019511016
      %v894 = vadd.f32 %v893, 0.008332121
      %v895 = vmul.f32 %v892, %v894
      %v896 = vadd.f32 %v895, -0.16666654
      %v897 = vmul.f32 %v892, %v896
      %v898 = vadd.f32 %v897, 1.0
      %v899 = vmul.f32 %v898, %v883
      %vm900 = vweird.f32 %v406
      %v901 = vadd.s32 %v884, 3
      %v902 = vand.u32 %v901, 3
      %vm903 = vcmp.lt.s32.totalorder %v902, 2
      %vm904 = vcmp.eq.s32.totalorder %v902, 0
      %v905 = vxor.u32 %v899, 2147483648
      %v906 = vsel %vm904, %v891, %v905
      %vm907 = vcmp.eq.s32.totalorder %v902, 2
      %v908 = vxor.u32 %v891, 2147483648
      %v909 = vsel %vm907, %v908, %v899
      %v910 = vsel %vm903, %v906, %v909
      %v911 = vsel %vm900, nan, %v910
      %v912 = vand.u32 2147483647, %v409
      %vm913 = vcmp.le.f32.partialorder %v912, 0.7853982
      %vm914 = vcmp.lt.s32.totalorder %v409, 0
      %v915 = vand.u32 %v409, 2139095040
      %v916 = vshrl.u32 %v915, 23
      %v917 = vsub.s32 %v916, 127
      %v918 = vand.u32 2147483647, %v409
      %v919 = vand.u32 %v918, 8388607
      %v920 = vor.u32 %v919, 8388608
      %v921 = vsub.s32 0, %v920
      %v922 = vadd.s32 %v917, 1
      %vm923 = vcmp.gt.s32.totalorder %v922, 0
      %v924 = vsel %vm923, %v922, 0
      %v925 = vshrl.u32 %v924, 5
      %v926 = vand.u32 %v924, 31
      %v927 = vsub.s32 32, %v926
      %v928 = vshrl.u32 683565275, %v927
      %v929 = vshll.u32 683565275, %v926
      %v930 = vshrl.u32 2475754826, %v927
      %v931 = vor.u32 %v929, %v930
      %v932 = vshll.u32 2475754826, %v926
      %v933 = vshrl.u32 2131351028, %v927
      %v934 = vor.u32 %v932, %v933
      %v935 = vshll.u32 2131351028, %v926
      %v936 = vshrl.u32 2102212464, %v927
      %v937 = vor.u32 %v935, %v936
      %v938 = vshll.u32 2102212464, %v926
      %v939 = vshrl.u32 920167782, %v927
      %v940 = vor.u32 %v938, %v939
      %v941 = vshll.u32 920167782, %v926
      %v942 = vshrl.u32 1326507024, %v927
      %v943 = vor.u32 %v941, %v942
      %vm944 = vcmp.lt.s32.totalorder %v925, 1
      %vm945 = vcmp.lt.s32.totalorder %v925, 2
      %vm946 = vcmp.lt.s32.totalorder %v925, 3
      %vm947 = vcmp.lt.s32.totalorder %v925, 4
      %v948 = vsel %vm944, %v928, %v931
      %v949 = vsel %vm947, %v937, 2102212464
      %v950 = vsel %vm946, %v934, %v949
      %v951 = vsel %vm945, %v948, %v950
      %v952 = vsel %vm944, %v931, %v934
      %v953 = vsel %vm947, %v940, 920167782
      %v954 = vsel %vm946, %v937, %v953
      %v955 = vsel %vm945, %v952, %v954
      %v956 = vsel %vm944, %v934, %v937
      %v957 = vsel %vm947, %v943, 1326507024
      %v958 = vsel %vm946, %v940, %v957
      %v959 = vsel %vm945, %v956, %v958
      %v960 = vshll.u32 %v920, 8
      %v961 = vand.u32 %v960, 65535
      %v962 = vshrl.u32 %v960, 16
      %v963 = vand.u32 %v959, 65535
      %v964 = vshrl.u32 %v959, 16
      %v965 = vmul.u32 %v961, %v963
      %v966 = vmul.u32 %v961, %v964
      %v967 = vmul.u32 %v962, %v963
      %v968 = vmul.u32 %v962, %v964
      %v969 = vshll.u32 %v966, 16
      %v970 = vshrl.u32 %v966, 16
      %v971 = vshll.u32 %v967, 16
      %v972 = vshrl.u32 %v967, 16
      %vm973 = vc.u32 %v965, %v969
      %v974 = vsel %vm973, 1, 0
      %v975 = vadd.s32 %v965, %v969
      %v976 = vadd.s32 %v968, %v974
      %vm977 = vc.u32 %v975, %v971
      %v978 = vsel %vm977, 1, 0
      %v979 = vadd.s32 %v975, %v971
      %v980 = vadd.s32 %v976, %v978
      %v981 = vadd.s32 %v980, %v970
      %v982 = vadd.s32 %v981, %v972
      %v983 = vand.u32 %v960, 65535
      %v984 = vshrl.u32 %v960, 16
      %v985 = vand.u32 %v955, 65535
      %v986 = vshrl.u32 %v955, 16
      %v987 = vmul.u32 %v983, %v985
      %v988 = vmul.u32 %v983, %v986
      %v989 = vmul.u32 %v984, %v985
      %v990 = vmul.u32 %v984, %v986
      %v991 = vshll.u32 %v988, 16
      %v992 = vshrl.u32 %v988, 16
      %v993 = vshll.u32 %v989, 16
      %v994 = vshrl.u32 %v989, 16
      %vm995 = vc.u32 %v987, %v991
      %v996 = vsel %vm995, 1, 0
      %v997 = vadd.s32 %v987, %v991
      %v998 = vadd.s32 %v990, %v996
      %vm999 = vc.u32 %v997, %v993
      %v1000 = vsel %vm999, 1, 0
      %v1001 = vadd.s32 %v997, %v993
      %v1002 = vadd.s32 %v998, %v1000
      %v1003 = vadd.s32 %v1002, %v992
      %v1004 = vadd.s32 %v1003, %v994
      %v1005 = vmul.u32 %v960, %v951
      %v1006 = vadd.s32 %v982, %v1001
      %vm1007 = vc.u32 %v982, %v1001
      %v1008 = vadd.s32 %v1004, 1
      %v1009 = vsel %vm1007, %v1008, %v1004
      %v1010 = vadd.s32 %v1005, %v1009
      %v1011 = vadd.s32 %v1010, 536870912
      %v1012 = vshrl.u32 %v1011, 30
      %v1013 = vshll.u32 %v1012, 30
      %v1014 = vsub.s32 %v1010, %v1013
      %vm1015 = vcmp.lt.s32.totalorder %v1014, 0
      %v1016 = vsub.s32 0, %v1014
      %v1017 = vsel %vm1015, %v1016, %v1014
      %v1018 = vclz %v1017
      %v1019 = vsub.s32 %v1018, 2
      %vm1020 = vcmp.gt.s32.totalorder 0, %v1019
      %v1021 = vsel %vm1020, 0, %v1019
      %v1022 = vsub.s32 32, %v1021
      %v1023 = vshll.u32 %v1014, %v1021
      %v1024 = vshrl.u32 %v1006, %v1022
      %v1025 = vor.u32 %v1023, %v1024
      %v1026 = vsub.s32 4294967266, %v1021
      %v1027 = vadd.s32 %v1026, 127
      %v1028 = vshll.u32 %v1027, 23
      %v1029 = vor.u32 4788187, %v1028
      %v1030 = vand.u32 2147483647, %v1029
      %v1032 = vcvt.s32.f32 %v1025
      %v1033 = vmul.f32 %v1032, %v1030
      %v1034 = vxor.u32 %v1033, 2147483648
      %v1035 = vsel %vm914, %v1034, %v1033
      %v1036 = vsub.s32 4, %v1012
      %v1037 = vsel %vm914, %v1036, %v1012
      %v1038 = vsel %vm913, %v409, %v1035
      %v1039 = vsel %vm913, 0, %v1037
      %v1040 = vmul.f32 %v1038, %v1038
      %v1041 = vmul.f32 %v1040, -0.001358992
      %v1042 = vadd.f32 %v1041, 0.041655596
      %v1043 = vmul.f32 %v1040, %v1042
      %v1044 = vadd.f32 %v1043, -0.4999988
      %v1045 = vmul.f32 %v1040, %v1044
      %v1046 = vadd.f32 1.0, %v1045
      %v1047 = vmul.f32 %v1038, %v1038
      %v1048 = vmul.f32 %v1047, -0.00019511016
      %v1049 = vadd.f32 %v1048, 0.008332121
      %v1050 = vmul.f32 %v1047, %v1049
      %v1051 = vadd.f32 %v1050, -0.16666654
      %v1052 = vmul.f32 %v1047, %v1051
      %v1053 = vadd.f32 %v1052, 1.0
      %v1054 = vmul.f32 %v1053, %v1038
      %vm1055 = vweird.f32 %v409
      %v1056 = vadd.s32 %v1039, 3
      %v1057 = vand.u32 %v1056, 3
      %vm1058 = vcmp.lt.s32.totalorder %v1057, 2
      %vm1059 = vcmp.eq.s32.totalorder %v1057, 0
      %v1060 = vxor.u32 %v1054, 2147483648
      %v1061 = vsel %vm1059, %v1046, %v1060
      %vm1062 = vcmp.eq.s32.totalorder %v1057, 2
      %v1063 = vxor.u32 %v1046, 2147483648
      %v1064 = vsel %vm1062, %v1063, %v1054
      %v1065 = vsel %vm1058, %v1061, %v1064
      %v1066 = vsel %vm1055, nan, %v1065
      %v1067 = vand.u32 2147483647, %v412
      %vm1068 = vcmp.le.f32.partialorder %v1067, 0.7853982
      %vm1069 = vcmp.lt.s32.totalorder %v412, 0
      %v1070 = vand.u32 %v412, 2139095040
      %v1071 = vshrl.u32 %v1070, 23
      %v1072 = vsub.s32 %v1071, 127
      %v1073 = vand.u32 2147483647, %v412
      %v1074 = vand.u32 %v1073, 8388607
      %v1075 = vor.u32 %v1074, 8388608
      %v1076 = vsub.s32 0, %v1075
      %v1077 = vadd.s32 %v1072, 1
      %vm1078 = vcmp.gt.s32.totalorder %v1077, 0
      %v1079 = vsel %vm1078, %v1077, 0
      %v1080 = vshrl.u32 %v1079, 5
      %v1081 = vand.u32 %v1079, 31
      %v1082 = vsub.s32 32, %v1081
      %v1083 = vshrl.u32 683565275, %v1082
      %v1084 = vshll.u32 683565275, %v1081
      %v1085 = vshrl.u32 2475754826, %v1082
      %v1086 = vor.u32 %v1084, %v1085
      %v1087 = vshll.u32 2475754826, %v1081
      %v1088 = vshrl.u32 2131351028, %v1082
      %v1089 = vor.u32 %v1087, %v1088
      %v1090 = vshll.u32 2131351028, %v1081
      %v1091 = vshrl.u32 2102212464, %v1082
      %v1092 = vor.u32 %v1090, %v1091
      %v1093 = vshll.u32 2102212464, %v1081
      %v1094 = vshrl.u32 920167782, %v1082
      %v1095 = vor.u32 %v1093, %v1094
      %v1096 = vshll.u32 920167782, %v1081
      %v1097 = vshrl.u32 1326507024, %v1082
      %v1098 = vor.u32 %v1096, %v1097
      %vm1099 = vcmp.lt.s32.totalorder %v1080, 1
      %vm1100 = vcmp.lt.s32.totalorder %v1080, 2
      %vm1101 = vcmp.lt.s32.totalorder %v1080, 3
      %vm1102 = vcmp.lt.s32.totalorder %v1080, 4
      %v1103 = vsel %vm1099, %v1083, %v1086
      %v1104 = vsel %vm1102, %v1092, 2102212464
      %v1105 = vsel %vm1101, %v1089, %v1104
      %v1106 = vsel %vm1100, %v1103, %v1105
      %v1107 = vsel %vm1099, %v1086, %v1089
      %v1108 = vsel %vm1102, %v1095, 920167782
      %v1109 = vsel %vm1101, %v1092, %v1108
      %v1110 = vsel %vm1100, %v1107, %v1109
      %v1111 = vsel %vm1099, %v1089, %v1092
      %v1112 = vsel %vm1102, %v1098, 1326507024
      %v1113 = vsel %vm1101, %v1095, %v1112
      %v1114 = vsel %vm1100, %v1111, %v1113
      %v1115 = vshll.u32 %v1075, 8
      %v1116 = vand.u32 %v1115, 65535
      %v1117 = vshrl.u32 %v1115, 16
      %v1118 = vand.u32 %v1114, 65535
      %v1119 = vshrl.u32 %v1114, 16
      %v1120 = vmul.u32 %v1116, %v1118
      %v1121 = vmul.u32 %v1116, %v1119
      %v1122 = vmul.u32 %v1117, %v1118
      %v1123 = vmul.u32 %v1117, %v1119
      %v1124 = vshll.u32 %v1121, 16
      %v1125 = vshrl.u32 %v1121, 16
      %v1126 = vshll.u32 %v1122, 16
      %v1127 = vshrl.u32 %v1122, 16
      %vm1128 = vc.u32 %v1120, %v1124
      %v1129 = vsel %vm1128, 1, 0
      %v1130 = vadd.s32 %v1120, %v1124
      %v1131 = vadd.s32 %v1123, %v1129
      %vm1132 = vc.u32 %v1130, %v1126
      %v1133 = vsel %vm1132, 1, 0
      %v1134 = vadd.s32 %v1130, %v1126
      %v1135 = vadd.s32 %v1131, %v1133
      %v1136 = vadd.s32 %v1135, %v1125
      %v1137 = vadd.s32 %v1136, %v1127
      %v1138 = vand.u32 %v1115, 65535
      %v1139 = vshrl.u32 %v1115, 16
      %v1140 = vand.u32 %v1110, 65535
      %v1141 = vshrl.u32 %v1110, 16
      %v1142 = vmul.u32 %v1138, %v1140
      %v1143 = vmul.u32 %v1138, %v1141
      %v1144 = vmul.u32 %v1139, %v1140
      %v1145 = vmul.u32 %v1139, %v1141
      %v1146 = vshll.u32 %v1143, 16
      %v1147 = vshrl.u32 %v1143, 16
      %v1148 = vshll.u32 %v1144, 16
      %v1149 = vshrl.u32 %v1144, 16
      %vm1150 = vc.u32 %v1142, %v1146
      %v1151 = vsel %vm1150, 1, 0
      %v1152 = vadd.s32 %v1142, %v1146
      %v1153 = vadd.s32 %v1145, %v1151
      %vm1154 = vc.u32 %v1152, %v1148
      %v1155 = vsel %vm1154, 1, 0
      %v1156 = vadd.s32 %v1152, %v1148
      %v1157 = vadd.s32 %v1153, %v1155
      %v1158 = vadd.s32 %v1157, %v1147
      %v1159 = vadd.s32 %v1158, %v1149
      %v1160 = vmul.u32 %v1115, %v1106
      %v1161 = vadd.s32 %v1137, %v1156
      %vm1162 = vc.u32 %v1137, %v1156
      %v1163 = vadd.s32 %v1159, 1
      %v1164 = vsel %vm1162, %v1163, %v1159
      %v1165 = vadd.s32 %v1160, %v1164
      %v1166 = vadd.s32 %v1165, 536870912
      %v1167 = vshrl.u32 %v1166, 30
      %v1168 = vshll.u32 %v1167, 30
      %v1169 = vsub.s32 %v1165, %v1168
      %vm1170 = vcmp.lt.s32.totalorder %v1169, 0
      %v1171 = vsub.s32 0, %v1169
      %v1172 = vsel %vm1170, %v1171, %v1169
      %v1173 = vclz %v1172
      %v1174 = vsub.s32 %v1173, 2
      %vm1175 = vcmp.gt.s32.totalorder 0, %v1174
      %v1176 = vsel %vm1175, 0, %v1174
      %v1177 = vsub.s32 32, %v1176
      %v1178 = vshll.u32 %v1169, %v1176
      %v1179 = vshrl.u32 %v1161, %v1177
      %v1180 = vor.u32 %v1178, %v1179
      %v1181 = vsub.s32 4294967266, %v1176
      %v1182 = vadd.s32 %v1181, 127
      %v1183 = vshll.u32 %v1182, 23
      %v1184 = vor.u32 4788187, %v1183
      %v1185 = vand.u32 2147483647, %v1184
      %v1187 = vcvt.s32.f32 %v1180
      %v1188 = vmul.f32 %v1187, %v1185
      %v1189 = vxor.u32 %v1188, 2147483648
      %v1190 = vsel %vm1069, %v1189, %v1188
      %v1191 = vsub.s32 4, %v1167
      %v1192 = vsel %vm1069, %v1191, %v1167
      %v1193 = vsel %vm1068, %v412, %v1190
      %v1194 = vsel %vm1068, 0, %v1192
      %v1195 = vmul.f32 %v1193, %v1193
      %v1196 = vmul.f32 %v1195, -0.001358992
      %v1197 = vadd.f32 %v1196, 0.041655596
      %v1198 = vmul.f32 %v1195, %v1197
      %v1199 = vadd.f32 %v1198, -0.4999988
      %v1200 = vmul.f32 %v1195, %v1199
      %v1201 = vadd.f32 1.0, %v1200
      %v1202 = vmul.f32 %v1193, %v1193
      %v1203 = vmul.f32 %v1202, -0.00019511016
      %v1204 = vadd.f32 %v1203, 0.008332121
      %v1205 = vmul.f32 %v1202, %v1204
      %v1206 = vadd.f32 %v1205, -0.16666654
      %v1207 = vmul.f32 %v1202, %v1206
      %v1208 = vadd.f32 %v1207, 1.0
      %v1209 = vmul.f32 %v1208, %v1193
      %vm1210 = vweird.f32 %v412
      %v1211 = vadd.s32 %v1194, 3
      %v1212 = vand.u32 %v1211, 3
      %vm1213 = vcmp.lt.s32.totalorder %v1212, 2
      %vm1214 = vcmp.eq.s32.totalorder %v1212, 0
      %v1215 = vxor.u32 %v1209, 2147483648
      %v1216 = vsel %vm1214, %v1201, %v1215
      %vm1217 = vcmp.eq.s32.totalorder %v1212, 2
      %v1218 = vxor.u32 %v1201, 2147483648
      %v1219 = vsel %vm1217, %v1218, %v1209
      %v1220 = vsel %vm1213, %v1216, %v1219
      %v1221 = vsel %vm1210, nan, %v1220
      %v1222 = vand.u32 2147483647, %v415
      %vm1223 = vcmp.le.f32.partialorder %v1222, 0.7853982
      %vm1224 = vcmp.lt.s32.totalorder %v415, 0
      %v1225 = vand.u32 %v415, 2139095040
      %v1226 = vshrl.u32 %v1225, 23
      %v1227 = vsub.s32 %v1226, 127
      %v1228 = vand.u32 2147483647, %v415
      %v1229 = vand.u32 %v1228, 8388607
      %v1230 = vor.u32 %v1229, 8388608
      %v1231 = vsub.s32 0, %v1230
      %v1232 = vadd.s32 %v1227, 1
      %vm1233 = vcmp.gt.s32.totalorder %v1232, 0
      %v1234 = vsel %vm1233, %v1232, 0
      %v1235 = vshrl.u32 %v1234, 5
      %v1236 = vand.u32 %v1234, 31
      %v1237 = vsub.s32 32, %v1236
      %v1238 = vshrl.u32 683565275, %v1237
      %v1239 = vshll.u32 683565275, %v1236
      %v1240 = vshrl.u32 2475754826, %v1237
      %v1241 = vor.u32 %v1239, %v1240
      %v1242 = vshll.u32 2475754826, %v1236
      %v1243 = vshrl.u32 2131351028, %v1237
      %v1244 = vor.u32 %v1242, %v1243
      %v1245 = vshll.u32 2131351028, %v1236
      %v1246 = vshrl.u32 2102212464, %v1237
      %v1247 = vor.u32 %v1245, %v1246
      %v1248 = vshll.u32 2102212464, %v1236
      %v1249 = vshrl.u32 920167782, %v1237
      %v1250 = vor.u32 %v1248, %v1249
      %v1251 = vshll.u32 920167782, %v1236
      %v1252 = vshrl.u32 1326507024, %v1237
      %v1253 = vor.u32 %v1251, %v1252
      %vm1254 = vcmp.lt.s32.totalorder %v1235, 1
      %vm1255 = vcmp.lt.s32.totalorder %v1235, 2
      %vm1256 = vcmp.lt.s32.totalorder %v1235, 3
      %vm1257 = vcmp.lt.s32.totalorder %v1235, 4
      %v1258 = vsel %vm1254, %v1238, %v1241
      %v1259 = vsel %vm1257, %v1247, 2102212464
      %v1260 = vsel %vm1256, %v1244, %v1259
      %v1261 = vsel %vm1255, %v1258, %v1260
      %v1262 = vsel %vm1254, %v1241, %v1244
      %v1263 = vsel %vm1257, %v1250, 920167782
      %v1264 = vsel %vm1256, %v1247, %v1263
      %v1265 = vsel %vm1255, %v1262, %v1264
      %v1266 = vsel %vm1254, %v1244, %v1247
      %v1267 = vsel %vm1257, %v1253, 1326507024
      %v1268 = vsel %vm1256, %v1250, %v1267
      %v1269 = vsel %vm1255, %v1266, %v1268
      %v1270 = vshll.u32 %v1230, 8
      %v1271 = vand.u32 %v1270, 65535
      %v1272 = vshrl.u32 %v1270, 16
      %v1273 = vand.u32 %v1269, 65535
      %v1274 = vshrl.u32 %v1269, 16
      %v1275 = vmul.u32 %v1271, %v1273
      %v1276 = vmul.u32 %v1271, %v1274
      %v1277 = vmul.u32 %v1272, %v1273
      %v1278 = vmul.u32 %v1272, %v1274
      %v1279 = vshll.u32 %v1276, 16
      %v1280 = vshrl.u32 %v1276, 16
      %v1281 = vshll.u32 %v1277, 16
      %v1282 = vshrl.u32 %v1277, 16
      %vm1283 = vc.u32 %v1275, %v1279
      %v1284 = vsel %vm1283, 1, 0
      %v1285 = vadd.s32 %v1275, %v1279
      %v1286 = vadd.s32 %v1278, %v1284
      %vm1287 = vc.u32 %v1285, %v1281
      %v1288 = vsel %vm1287, 1, 0
      %v1289 = vadd.s32 %v1285, %v1281
      %v1290 = vadd.s32 %v1286, %v1288
      %v1291 = vadd.s32 %v1290, %v1280
      %v1292 = vadd.s32 %v1291, %v1282
      %v1293 = vand.u32 %v1270, 65535
      %v1294 = vshrl.u32 %v1270, 16
      %v1295 = vand.u32 %v1265, 65535
      %v1296 = vshrl.u32 %v1265, 16
      %v1297 = vmul.u32 %v1293, %v1295
      %v1298 = vmul.u32 %v1293, %v1296
      %v1299 = vmul.u32 %v1294, %v1295
      %v1300 = vmul.u32 %v1294, %v1296
      %v1301 = vshll.u32 %v1298, 16
      %v1302 = vshrl.u32 %v1298, 16
      %v1303 = vshll.u32 %v1299, 16
      %v1304 = vshrl.u32 %v1299, 16
      %vm1305 = vc.u32 %v1297, %v1301
      %v1306 = vsel %vm1305, 1, 0
      %v1307 = vadd.s32 %v1297, %v1301
      %v1308 = vadd.s32 %v1300, %v1306
      %vm1309 = vc.u32 %v1307, %v1303
      %v1310 = vsel %vm1309, 1, 0
      %v1311 = vadd.s32 %v1307, %v1303
      %v1312 = vadd.s32 %v1308, %v1310
      %v1313 = vadd.s32 %v1312, %v1302
      %v1314 = vadd.s32 %v1313, %v1304
      %v1315 = vmul.u32 %v1270, %v1261
      %v1316 = vadd.s32 %v1292, %v1311
      %vm1317 = vc.u32 %v1292, %v1311
      %v1318 = vadd.s32 %v1314, 1
      %v1319 = vsel %vm1317, %v1318, %v1314
      %v1320 = vadd.s32 %v1315, %v1319
      %v1321 = vadd.s32 %v1320, 536870912
      %v1322 = vshrl.u32 %v1321, 30
      %v1323 = vshll.u32 %v1322, 30
      %v1324 = vsub.s32 %v1320, %v1323
      %vm1325 = vcmp.lt.s32.totalorder %v1324, 0
      %v1326 = vsub.s32 0, %v1324
      %v1327 = vsel %vm1325, %v1326, %v1324
      %v1328 = vclz %v1327
      %v1329 = vsub.s32 %v1328, 2
      %vm1330 = vcmp.gt.s32.totalorder 0, %v1329
      %v1331 = vsel %vm1330, 0, %v1329
      %v1332 = vsub.s32 32, %v1331
      %v1333 = vshll.u32 %v1324, %v1331
      %v1334 = vshrl.u32 %v1316, %v1332
      %v1335 = vor.u32 %v1333, %v1334
      %v1336 = vsub.s32 4294967266, %v1331
      %v1337 = vadd.s32 %v1336, 127
      %v1338 = vshll.u32 %v1337, 23
      %v1339 = vor.u32 4788187, %v1338
      %v1340 = vand.u32 2147483647, %v1339
      %v1342 = vcvt.s32.f32 %v1335
      %v1343 = vmul.f32 %v1342, %v1340
      %v1344 = vxor.u32 %v1343, 2147483648
      %v1345 = vsel %vm1224, %v1344, %v1343
      %v1346 = vsub.s32 4, %v1322
      %v1347 = vsel %vm1224, %v1346, %v1322
      %v1348 = vsel %vm1223, %v415, %v1345
      %v1349 = vsel %vm1223, 0, %v1347
      %v1350 = vmul.f32 %v1348, %v1348
      %v1351 = vmul.f32 %v1350, -0.001358992
      %v1352 = vadd.f32 %v1351, 0.041655596
      %v1353 = vmul.f32 %v1350, %v1352
      %v1354 = vadd.f32 %v1353, -0.4999988
      %v1355 = vmul.f32 %v1350, %v1354
      %v1356 = vadd.f32 1.0, %v1355
      %v1357 = vmul.f32 %v1348, %v1348
      %v1358 = vmul.f32 %v1357, -0.00019511016
      %v1359 = vadd.f32 %v1358, 0.008332121
      %v1360 = vmul.f32 %v1357, %v1359
      %v1361 = vadd.f32 %v1360, -0.16666654
      %v1362 = vmul.f32 %v1357, %v1361
      %v1363 = vadd.f32 %v1362, 1.0
      %v1364 = vmul.f32 %v1363, %v1348
      %vm1365 = vweird.f32 %v415
      %v1366 = vadd.s32 %v1349, 3
      %v1367 = vand.u32 %v1366, 3
      %vm1368 = vcmp.lt.s32.totalorder %v1367, 2
      %vm1369 = vcmp.eq.s32.totalorder %v1367, 0
      %v1370 = vxor.u32 %v1364, 2147483648
      %v1371 = vsel %vm1369, %v1356, %v1370
      %vm1372 = vcmp.eq.s32.totalorder %v1367, 2
      %v1373 = vxor.u32 %v1356, 2147483648
      %v1374 = vsel %vm1372, %v1373, %v1364
      %v1375 = vsel %vm1368, %v1371, %v1374
      %v1376 = vsel %vm1365, nan, %v1375
      %v1377 = vand.u32 2147483647, %v418
      %vm1378 = vcmp.le.f32.partialorder %v1377, 0.7853982
      %vm1379 = vcmp.lt.s32.totalorder %v418, 0
      %v1380 = vand.u32 %v418, 2139095040
      %v1381 = vshrl.u32 %v1380, 23
      %v1382 = vsub.s32 %v1381, 127
      %v1383 = vand.u32 2147483647, %v418
      %v1384 = vand.u32 %v1383, 8388607
      %v1385 = vor.u32 %v1384, 8388608
      %v1386 = vsub.s32 0, %v1385
      %v1387 = vadd.s32 %v1382, 1
      %vm1388 = vcmp.gt.s32.totalorder %v1387, 0
      %v1389 = vsel %vm1388, %v1387, 0
      %v1390 = vshrl.u32 %v1389, 5
      %v1391 = vand.u32 %v1389, 31
      %v1392 = vsub.s32 32, %v1391
      %v1393 = vshrl.u32 683565275, %v1392
      %v1394 = vshll.u32 683565275, %v1391
      %v1395 = vshrl.u32 2475754826, %v1392
      %v1396 = vor.u32 %v1394, %v1395
      %v1397 = vshll.u32 2475754826, %v1391
      %v1398 = vshrl.u32 2131351028, %v1392
      %v1399 = vor.u32 %v1397, %v1398
      %v1400 = vshll.u32 2131351028, %v1391
      %v1401 = vshrl.u32 2102212464, %v1392
      %v1402 = vor.u32 %v1400, %v1401
      %v1403 = vshll.u32 2102212464, %v1391
      %v1404 = vshrl.u32 920167782, %v1392
      %v1405 = vor.u32 %v1403, %v1404
      %v1406 = vshll.u32 920167782, %v1391
      %v1407 = vshrl.u32 1326507024, %v1392
      %v1408 = vor.u32 %v1406, %v1407
      %vm1409 = vcmp.lt.s32.totalorder %v1390, 1
      %vm1410 = vcmp.lt.s32.totalorder %v1390, 2
      %vm1411 = vcmp.lt.s32.totalorder %v1390, 3
      %vm1412 = vcmp.lt.s32.totalorder %v1390, 4
      %v1413 = vsel %vm1409, %v1393, %v1396
      %v1414 = vsel %vm1412, %v1402, 2102212464
      %v1415 = vsel %vm1411, %v1399, %v1414
      %v1416 = vsel %vm1410, %v1413, %v1415
      %v1417 = vsel %vm1409, %v1396, %v1399
      %v1418 = vsel %vm1412, %v1405, 920167782
      %v1419 = vsel %vm1411, %v1402, %v1418
      %v1420 = vsel %vm1410, %v1417, %v1419
      %v1421 = vsel %vm1409, %v1399, %v1402
      %v1422 = vsel %vm1412, %v1408, 1326507024
      %v1423 = vsel %vm1411, %v1405, %v1422
      %v1424 = vsel %vm1410, %v1421, %v1423
      %v1425 = vshll.u32 %v1385, 8
      %v1426 = vand.u32 %v1425, 65535
      %v1427 = vshrl.u32 %v1425, 16
      %v1428 = vand.u32 %v1424, 65535
      %v1429 = vshrl.u32 %v1424, 16
      %v1430 = vmul.u32 %v1426, %v1428
      %v1431 = vmul.u32 %v1426, %v1429
      %v1432 = vmul.u32 %v1427, %v1428
      %v1433 = vmul.u32 %v1427, %v1429
      %v1434 = vshll.u32 %v1431, 16
      %v1435 = vshrl.u32 %v1431, 16
      %v1436 = vshll.u32 %v1432, 16
      %v1437 = vshrl.u32 %v1432, 16
      %vm1438 = vc.u32 %v1430, %v1434
      %v1439 = vsel %vm1438, 1, 0
      %v1440 = vadd.s32 %v1430, %v1434
      %v1441 = vadd.s32 %v1433, %v1439
      %vm1442 = vc.u32 %v1440, %v1436
      %v1443 = vsel %vm1442, 1, 0
      %v1444 = vadd.s32 %v1440, %v1436
      %v1445 = vadd.s32 %v1441, %v1443
      %v1446 = vadd.s32 %v1445, %v1435
      %v1447 = vadd.s32 %v1446, %v1437
      %v1448 = vand.u32 %v1425, 65535
      %v1449 = vshrl.u32 %v1425, 16
      %v1450 = vand.u32 %v1420, 65535
      %v1451 = vshrl.u32 %v1420, 16
      %v1452 = vmul.u32 %v1448, %v1450
      %v1453 = vmul.u32 %v1448, %v1451
      %v1454 = vmul.u32 %v1449, %v1450
      %v1455 = vmul.u32 %v1449, %v1451
      %v1456 = vshll.u32 %v1453, 16
      %v1457 = vshrl.u32 %v1453, 16
      %v1458 = vshll.u32 %v1454, 16
      %v1459 = vshrl.u32 %v1454, 16
      %vm1460 = vc.u32 %v1452, %v1456
      %v1461 = vsel %vm1460, 1, 0
      %v1462 = vadd.s32 %v1452, %v1456
      %v1463 = vadd.s32 %v1455, %v1461
      %vm1464 = vc.u32 %v1462, %v1458
      %v1465 = vsel %vm1464, 1, 0
      %v1466 = vadd.s32 %v1462, %v1458
      %v1467 = vadd.s32 %v1463, %v1465
      %v1468 = vadd.s32 %v1467, %v1457
      %v1469 = vadd.s32 %v1468, %v1459
      %v1470 = vmul.u32 %v1425, %v1416
      %v1471 = vadd.s32 %v1447, %v1466
      %vm1472 = vc.u32 %v1447, %v1466
      %v1473 = vadd.s32 %v1469, 1
      %v1474 = vsel %vm1472, %v1473, %v1469
      %v1475 = vadd.s32 %v1470, %v1474
      %v1476 = vadd.s32 %v1475, 536870912
      %v1477 = vshrl.u32 %v1476, 30
      %v1478 = vshll.u32 %v1477, 30
      %v1479 = vsub.s32 %v1475, %v1478
      %vm1480 = vcmp.lt.s32.totalorder %v1479, 0
      %v1481 = vsub.s32 0, %v1479
      %v1482 = vsel %vm1480, %v1481, %v1479
      %v1483 = vclz %v1482
      %v1484 = vsub.s32 %v1483, 2
      %vm1485 = vcmp.gt.s32.totalorder 0, %v1484
      %v1486 = vsel %vm1485, 0, %v1484
      %v1487 = vsub.s32 32, %v1486
      %v1488 = vshll.u32 %v1479, %v1486
      %v1489 = vshrl.u32 %v1471, %v1487
      %v1490 = vor.u32 %v1488, %v1489
      %v1491 = vsub.s32 4294967266, %v1486
      %v1492 = vadd.s32 %v1491, 127
      %v1493 = vshll.u32 %v1492, 23
      %v1494 = vor.u32 4788187, %v1493
      %v1495 = vand.u32 2147483647, %v1494
      %v1497 = vcvt.s32.f32 %v1490
      %v1498 = vmul.f32 %v1497, %v1495
      %v1499 = vxor.u32 %v1498, 2147483648
      %v1500 = vsel %vm1379, %v1499, %v1498
      %v1501 = vsub.s32 4, %v1477
      %v1502 = vsel %vm1379, %v1501, %v1477
      %v1503 = vsel %vm1378, %v418, %v1500
      %v1504 = vsel %vm1378, 0, %v1502
      %v1505 = vmul.f32 %v1503, %v1503
      %v1506 = vmul.f32 %v1505, -0.001358992
      %v1507 = vadd.f32 %v1506, 0.041655596
      %v1508 = vmul.f32 %v1505, %v1507
      %v1509 = vadd.f32 %v1508, -0.4999988
      %v1510 = vmul.f32 %v1505, %v1509
      %v1511 = vadd.f32 1.0, %v1510
      %v1512 = vmul.f32 %v1503, %v1503
      %v1513 = vmul.f32 %v1512, -0.00019511016
      %v1514 = vadd.f32 %v1513, 0.008332121
      %v1515 = vmul.f32 %v1512, %v1514
      %v1516 = vadd.f32 %v1515, -0.16666654
      %v1517 = vmul.f32 %v1512, %v1516
      %v1518 = vadd.f32 %v1517, 1.0
      %v1519 = vmul.f32 %v1518, %v1503
      %vm1520 = vweird.f32 %v418
      %v1521 = vadd.s32 %v1504, 3
      %v1522 = vand.u32 %v1521, 3
      %vm1523 = vcmp.lt.s32.totalorder %v1522, 2
      %vm1524 = vcmp.eq.s32.totalorder %v1522, 0
      %v1525 = vxor.u32 %v1519, 2147483648
      %v1526 = vsel %vm1524, %v1511, %v1525
      %vm1527 = vcmp.eq.s32.totalorder %v1522, 2
      %v1528 = vxor.u32 %v1511, 2147483648
      %v1529 = vsel %vm1527, %v1528, %v1519
      %v1530 = vsel %vm1523, %v1526, %v1529
      %v1531 = vsel %vm1520, nan, %v1530
      %v1532 = vand.u32 2147483647, %v421
      %vm1533 = vcmp.le.f32.partialorder %v1532, 0.7853982
      %vm1534 = vcmp.lt.s32.totalorder %v421, 0
      %v1535 = vand.u32 %v421, 2139095040
      %v1536 = vshrl.u32 %v1535, 23
      %v1537 = vsub.s32 %v1536, 127
      %v1538 = vand.u32 2147483647, %v421
      %v1539 = vand.u32 %v1538, 8388607
      %v1540 = vor.u32 %v1539, 8388608
      %v1541 = vsub.s32 0, %v1540
      %v1542 = vadd.s32 %v1537, 1
      %vm1543 = vcmp.gt.s32.totalorder %v1542, 0
      %v1544 = vsel %vm1543, %v1542, 0
      %v1545 = vshrl.u32 %v1544, 5
      %v1546 = vand.u32 %v1544, 31
      %v1547 = vsub.s32 32, %v1546
      %v1548 = vshrl.u32 683565275, %v1547
      %v1549 = vshll.u32 683565275, %v1546
      %v1550 = vshrl.u32 2475754826, %v1547
      %v1551 = vor.u32 %v1549, %v1550
      %v1552 = vshll.u32 2475754826, %v1546
      %v1553 = vshrl.u32 2131351028, %v1547
      %v1554 = vor.u32 %v1552, %v1553
      %v1555 = vshll.u32 2131351028, %v1546
      %v1556 = vshrl.u32 2102212464, %v1547
      %v1557 = vor.u32 %v1555, %v1556
      %v1558 = vshll.u32 2102212464, %v1546
      %v1559 = vshrl.u32 920167782, %v1547
      %v1560 = vor.u32 %v1558, %v1559
      %v1561 = vshll.u32 920167782, %v1546
      %v1562 = vshrl.u32 1326507024, %v1547
      %v1563 = vor.u32 %v1561, %v1562
      %vm1564 = vcmp.lt.s32.totalorder %v1545, 1
      %vm1565 = vcmp.lt.s32.totalorder %v1545, 2
      %vm1566 = vcmp.lt.s32.totalorder %v1545, 3
      %vm1567 = vcmp.lt.s32.totalorder %v1545, 4
      %v1568 = vsel %vm1564, %v1548, %v1551
      %v1569 = vsel %vm1567, %v1557, 2102212464
      %v1570 = vsel %vm1566, %v1554, %v1569
      %v1571 = vsel %vm1565, %v1568, %v1570
      %v1572 = vsel %vm1564, %v1551, %v1554
      %v1573 = vsel %vm1567, %v1560, 920167782
      %v1574 = vsel %vm1566, %v1557, %v1573
      %v1575 = vsel %vm1565, %v1572, %v1574
      %v1576 = vsel %vm1564, %v1554, %v1557
      %v1577 = vsel %vm1567, %v1563, 1326507024
      %v1578 = vsel %vm1566, %v1560, %v1577
      %v1579 = vsel %vm1565, %v1576, %v1578
      %v1580 = vshll.u32 %v1540, 8
      %v1581 = vand.u32 %v1580, 65535
      %v1582 = vshrl.u32 %v1580, 16
      %v1583 = vand.u32 %v1579, 65535
      %v1584 = vshrl.u32 %v1579, 16
      %v1585 = vmul.u32 %v1581, %v1583
      %v1586 = vmul.u32 %v1581, %v1584
      %v1587 = vmul.u32 %v1582, %v1583
      %v1588 = vmul.u32 %v1582, %v1584
      %v1589 = vshll.u32 %v1586, 16
      %v1590 = vshrl.u32 %v1586, 16
      %v1591 = vshll.u32 %v1587, 16
      %v1592 = vshrl.u32 %v1587, 16
      %vm1593 = vc.u32 %v1585, %v1589
      %v1594 = vsel %vm1593, 1, 0
      %v1595 = vadd.s32 %v1585, %v1589
      %v1596 = vadd.s32 %v1588, %v1594
      %vm1597 = vc.u32 %v1595, %v1591
      %v1598 = vsel %vm1597, 1, 0
      %v1599 = vadd.s32 %v1595, %v1591
      %v1600 = vadd.s32 %v1596, %v1598
      %v1601 = vadd.s32 %v1600, %v1590
      %v1602 = vadd.s32 %v1601, %v1592
      %v1603 = vand.u32 %v1580, 65535
      %v1604 = vshrl.u32 %v1580, 16
      %v1605 = vand.u32 %v1575, 65535
      %v1606 = vshrl.u32 %v1575, 16
      %v1607 = vmul.u32 %v1603, %v1605
      %v1608 = vmul.u32 %v1603, %v1606
      %v1609 = vmul.u32 %v1604, %v1605
      %v1610 = vmul.u32 %v1604, %v1606
      %v1611 = vshll.u32 %v1608, 16
      %v1612 = vshrl.u32 %v1608, 16
      %v1613 = vshll.u32 %v1609, 16
      %v1614 = vshrl.u32 %v1609, 16
      %vm1615 = vc.u32 %v1607, %v1611
      %v1616 = vsel %vm1615, 1, 0
      %v1617 = vadd.s32 %v1607, %v1611
      %v1618 = vadd.s32 %v1610, %v1616
      %vm1619 = vc.u32 %v1617, %v1613
      %v1620 = vsel %vm1619, 1, 0
      %v1621 = vadd.s32 %v1617, %v1613
      %v1622 = vadd.s32 %v1618, %v1620
      %v1623 = vadd.s32 %v1622, %v1612
      %v1624 = vadd.s32 %v1623, %v1614
      %v1625 = vmul.u32 %v1580, %v1571
      %v1626 = vadd.s32 %v1602, %v1621
      %vm1627 = vc.u32 %v1602, %v1621
      %v1628 = vadd.s32 %v1624, 1
      %v1629 = vsel %vm1627, %v1628, %v1624
      %v1630 = vadd.s32 %v1625, %v1629
      %v1631 = vadd.s32 %v1630, 536870912
      %v1632 = vshrl.u32 %v1631, 30
      %v1633 = vshll.u32 %v1632, 30
      %v1634 = vsub.s32 %v1630, %v1633
      %vm1635 = vcmp.lt.s32.totalorder %v1634, 0
      %v1636 = vsub.s32 0, %v1634
      %v1637 = vsel %vm1635, %v1636, %v1634
      %v1638 = vclz %v1637
      %v1639 = vsub.s32 %v1638, 2
      %vm1640 = vcmp.gt.s32.totalorder 0, %v1639
      %v1641 = vsel %vm1640, 0, %v1639
      %v1642 = vsub.s32 32, %v1641
      %v1643 = vshll.u32 %v1634, %v1641
      %v1644 = vshrl.u32 %v1626, %v1642
      %v1645 = vor.u32 %v1643, %v1644
      %v1646 = vsub.s32 4294967266, %v1641
      %v1647 = vadd.s32 %v1646, 127
      %v1648 = vshll.u32 %v1647, 23
      %v1649 = vor.u32 4788187, %v1648
      %v1650 = vand.u32 2147483647, %v1649
      %v1652 = vcvt.s32.f32 %v1645
      %v1653 = vmul.f32 %v1652, %v1650
      %v1654 = vxor.u32 %v1653, 2147483648
      %v1655 = vsel %vm1534, %v1654, %v1653
      %v1656 = vsub.s32 4, %v1632
      %v1657 = vsel %vm1534, %v1656, %v1632
      %v1658 = vsel %vm1533, %v421, %v1655
      %v1659 = vsel %vm1533, 0, %v1657
      %v1660 = vmul.f32 %v1658, %v1658
      %v1661 = vmul.f32 %v1660, -0.001358992
      %v1662 = vadd.f32 %v1661, 0.041655596
      %v1663 = vmul.f32 %v1660, %v1662
      %v1664 = vadd.f32 %v1663, -0.4999988
      %v1665 = vmul.f32 %v1660, %v1664
      %v1666 = vadd.f32 1.0, %v1665
      %v1667 = vmul.f32 %v1658, %v1658
      %v1668 = vmul.f32 %v1667, -0.00019511016
      %v1669 = vadd.f32 %v1668, 0.008332121
      %v1670 = vmul.f32 %v1667, %v1669
      %v1671 = vadd.f32 %v1670, -0.16666654
      %v1672 = vmul.f32 %v1667, %v1671
      %v1673 = vadd.f32 %v1672, 1.0
      %v1674 = vmul.f32 %v1673, %v1658
      %vm1675 = vweird.f32 %v421
      %v1676 = vadd.s32 %v1659, 3
      %v1677 = vand.u32 %v1676, 3
      %vm1678 = vcmp.lt.s32.totalorder %v1677, 2
      %vm1679 = vcmp.eq.s32.totalorder %v1677, 0
      %v1680 = vxor.u32 %v1674, 2147483648
      %v1681 = vsel %vm1679, %v1666, %v1680
      %vm1682 = vcmp.eq.s32.totalorder %v1677, 2
      %v1683 = vxor.u32 %v1666, 2147483648
      %v1684 = vsel %vm1682, %v1683, %v1674
      %v1685 = vsel %vm1678, %v1681, %v1684
      %v1686 = vsel %vm1675, nan, %v1685
      %v1687 = vand.u32 2147483647, %v424
      %vm1688 = vcmp.le.f32.partialorder %v1687, 0.7853982
      %vm1689 = vcmp.lt.s32.totalorder %v424, 0
      %v1690 = vand.u32 %v424, 2139095040
      %v1691 = vshrl.u32 %v1690, 23
      %v1692 = vsub.s32 %v1691, 127
      %v1693 = vand.u32 2147483647, %v424
      %v1694 = vand.u32 %v1693, 8388607
      %v1695 = vor.u32 %v1694, 8388608
      %v1696 = vsub.s32 0, %v1695
      %v1697 = vadd.s32 %v1692, 1
      %vm1698 = vcmp.gt.s32.totalorder %v1697, 0
      %v1699 = vsel %vm1698, %v1697, 0
      %v1700 = vshrl.u32 %v1699, 5
      %v1701 = vand.u32 %v1699, 31
      %v1702 = vsub.s32 32, %v1701
      %v1703 = vshrl.u32 683565275, %v1702
      %v1704 = vshll.u32 683565275, %v1701
      %v1705 = vshrl.u32 2475754826, %v1702
      %v1706 = vor.u32 %v1704, %v1705
      %v1707 = vshll.u32 2475754826, %v1701
      %v1708 = vshrl.u32 2131351028, %v1702
      %v1709 = vor.u32 %v1707, %v1708
      %v1710 = vshll.u32 2131351028, %v1701
      %v1711 = vshrl.u32 2102212464, %v1702
      %v1712 = vor.u32 %v1710, %v1711
      %v1713 = vshll.u32 2102212464, %v1701
      %v1714 = vshrl.u32 920167782, %v1702
      %v1715 = vor.u32 %v1713, %v1714
      %v1716 = vshll.u32 920167782, %v1701
      %v1717 = vshrl.u32 1326507024, %v1702
      %v1718 = vor.u32 %v1716, %v1717
      %vm1719 = vcmp.lt.s32.totalorder %v1700, 1
      %vm1720 = vcmp.lt.s32.totalorder %v1700, 2
      %vm1721 = vcmp.lt.s32.totalorder %v1700, 3
      %vm1722 = vcmp.lt.s32.totalorder %v1700, 4
      %v1723 = vsel %vm1719, %v1703, %v1706
      %v1724 = vsel %vm1722, %v1712, 2102212464
      %v1725 = vsel %vm1721, %v1709, %v1724
      %v1726 = vsel %vm1720, %v1723, %v1725
      %v1727 = vsel %vm1719, %v1706, %v1709
      %v1728 = vsel %vm1722, %v1715, 920167782
      %v1729 = vsel %vm1721, %v1712, %v1728
      %v1730 = vsel %vm1720, %v1727, %v1729
      %v1731 = vsel %vm1719, %v1709, %v1712
      %v1732 = vsel %vm1722, %v1718, 1326507024
      %v1733 = vsel %vm1721, %v1715, %v1732
      %v1734 = vsel %vm1720, %v1731, %v1733
      %v1735 = vshll.u32 %v1695, 8
      %v1736 = vand.u32 %v1735, 65535
      %v1737 = vshrl.u32 %v1735, 16
      %v1738 = vand.u32 %v1734, 65535
      %v1739 = vshrl.u32 %v1734, 16
      %v1740 = vmul.u32 %v1736, %v1738
      %v1741 = vmul.u32 %v1736, %v1739
      %v1742 = vmul.u32 %v1737, %v1738
      %v1743 = vmul.u32 %v1737, %v1739
      %v1744 = vshll.u32 %v1741, 16
      %v1745 = vshrl.u32 %v1741, 16
      %v1746 = vshll.u32 %v1742, 16
      %v1747 = vshrl.u32 %v1742, 16
      %vm1748 = vc.u32 %v1740, %v1744
      %v1749 = vsel %vm1748, 1, 0
      %v1750 = vadd.s32 %v1740, %v1744
      %v1751 = vadd.s32 %v1743, %v1749
      %vm1752 = vc.u32 %v1750, %v1746
      %v1753 = vsel %vm1752, 1, 0
      %v1754 = vadd.s32 %v1750, %v1746
      %v1755 = vadd.s32 %v1751, %v1753
      %v1756 = vadd.s32 %v1755, %v1745
      %v1757 = vadd.s32 %v1756, %v1747
      %v1758 = vand.u32 %v1735, 65535
      %v1759 = vshrl.u32 %v1735, 16
      %v1760 = vand.u32 %v1730, 65535
      %v1761 = vshrl.u32 %v1730, 16
      %v1762 = vmul.u32 %v1758, %v1760
      %v1763 = vmul.u32 %v1758, %v1761
      %v1764 = vmul.u32 %v1759, %v1760
      %v1765 = vmul.u32 %v1759, %v1761
      %v1766 = vshll.u32 %v1763, 16
      %v1767 = vshrl.u32 %v1763, 16
      %v1768 = vshll.u32 %v1764, 16
      %v1769 = vshrl.u32 %v1764, 16
      %vm1770 = vc.u32 %v1762, %v1766
      %v1771 = vsel %vm1770, 1, 0
      %v1772 = vadd.s32 %v1762, %v1766
      %v1773 = vadd.s32 %v1765, %v1771
      %vm1774 = vc.u32 %v1772, %v1768
      %v1775 = vsel %vm1774, 1, 0
      %v1776 = vadd.s32 %v1772, %v1768
      %v1777 = vadd.s32 %v1773, %v1775
      %v1778 = vadd.s32 %v1777, %v1767
      %v1779 = vadd.s32 %v1778, %v1769
      %v1780 = vmul.u32 %v1735, %v1726
      %v1781 = vadd.s32 %v1757, %v1776
      %vm1782 = vc.u32 %v1757, %v1776
      %v1783 = vadd.s32 %v1779, 1
      %v1784 = vsel %vm1782, %v1783, %v1779
      %v1785 = vadd.s32 %v1780, %v1784
      %v1786 = vadd.s32 %v1785, 536870912
      %v1787 = vshrl.u32 %v1786, 30
      %v1788 = vshll.u32 %v1787, 30
      %v1789 = vsub.s32 %v1785, %v1788
      %vm1790 = vcmp.lt.s32.totalorder %v1789, 0
      %v1791 = vsub.s32 0, %v1789
      %v1792 = vsel %vm1790, %v1791, %v1789
      %v1793 = vclz %v1792
      %v1794 = vsub.s32 %v1793, 2
      %vm1795 = vcmp.gt.s32.totalorder 0, %v1794
      %v1796 = vsel %vm1795, 0, %v1794
      %v1797 = vsub.s32 32, %v1796
      %v1798 = vshll.u32 %v1789, %v1796
      %v1799 = vshrl.u32 %v1781, %v1797
      %v1800 = vor.u32 %v1798, %v1799
      %v1801 = vsub.s32 4294967266, %v1796
      %v1802 = vadd.s32 %v1801, 127
      %v1803 = vshll.u32 %v1802, 23
      %v1804 = vor.u32 4788187, %v1803
      %v1805 = vand.u32 2147483647, %v1804
      %v1807 = vcvt.s32.f32 %v1800
      %v1808 = vmul.f32 %v1807, %v1805
      %v1809 = vxor.u32 %v1808, 2147483648
      %v1810 = vsel %vm1689, %v1809, %v1808
      %v1811 = vsub.s32 4, %v1787
      %v1812 = vsel %vm1689, %v1811, %v1787
      %v1813 = vsel %vm1688, %v424, %v1810
      %v1814 = vsel %vm1688, 0, %v1812
      %v1815 = vmul.f32 %v1813, %v1813
      %v1816 = vmul.f32 %v1815, -0.001358992
      %v1817 = vadd.f32 %v1816, 0.041655596
      %v1818 = vmul.f32 %v1815, %v1817
      %v1819 = vadd.f32 %v1818, -0.4999988
      %v1820 = vmul.f32 %v1815, %v1819
      %v1821 = vadd.f32 1.0, %v1820
      %v1822 = vmul.f32 %v1813, %v1813
      %v1823 = vmul.f32 %v1822, -0.00019511016
      %v1824 = vadd.f32 %v1823, 0.008332121
      %v1825 = vmul.f32 %v1822, %v1824
      %v1826 = vadd.f32 %v1825, -0.16666654
      %v1827 = vmul.f32 %v1822, %v1826
      %v1828 = vadd.f32 %v1827, 1.0
      %v1829 = vmul.f32 %v1828, %v1813
      %vm1830 = vweird.f32 %v424
      %v1831 = vadd.s32 %v1814, 3
      %v1832 = vand.u32 %v1831, 3
      %vm1833 = vcmp.lt.s32.totalorder %v1832, 2
      %vm1834 = vcmp.eq.s32.totalorder %v1832, 0
      %v1835 = vxor.u32 %v1829, 2147483648
      %v1836 = vsel %vm1834, %v1821, %v1835
      %vm1837 = vcmp.eq.s32.totalorder %v1832, 2
      %v1838 = vxor.u32 %v1821, 2147483648
      %v1839 = vsel %vm1837, %v1838, %v1829
      %v1840 = vsel %vm1833, %v1836, %v1839
      %v1841 = vsel %vm1830, nan, %v1840
      %v1842 = vand.u32 2147483647, %v427
      %vm1843 = vcmp.le.f32.partialorder %v1842, 0.7853982
      %vm1844 = vcmp.lt.s32.totalorder %v427, 0
      %v1845 = vand.u32 %v427, 2139095040
      %v1846 = vshrl.u32 %v1845, 23
      %v1847 = vsub.s32 %v1846, 127
      %v1848 = vand.u32 2147483647, %v427
      %v1849 = vand.u32 %v1848, 8388607
      %v1850 = vor.u32 %v1849, 8388608
      %v1851 = vsub.s32 0, %v1850
      %v1852 = vadd.s32 %v1847, 1
      %vm1853 = vcmp.gt.s32.totalorder %v1852, 0
      %v1854 = vsel %vm1853, %v1852, 0
      %v1855 = vshrl.u32 %v1854, 5
      %v1856 = vand.u32 %v1854, 31
      %v1857 = vsub.s32 32, %v1856
      %v1858 = vshrl.u32 683565275, %v1857
      %v1859 = vshll.u32 683565275, %v1856
      %v1860 = vshrl.u32 2475754826, %v1857
      %v1861 = vor.u32 %v1859, %v1860
      %v1862 = vshll.u32 2475754826, %v1856
      %v1863 = vshrl.u32 2131351028, %v1857
      %v1864 = vor.u32 %v1862, %v1863
      %v1865 = vshll.u32 2131351028, %v1856
      %v1866 = vshrl.u32 2102212464, %v1857
      %v1867 = vor.u32 %v1865, %v1866
      %v1868 = vshll.u32 2102212464, %v1856
      %v1869 = vshrl.u32 920167782, %v1857
      %v1870 = vor.u32 %v1868, %v1869
      %v1871 = vshll.u32 920167782, %v1856
      %v1872 = vshrl.u32 1326507024, %v1857
      %v1873 = vor.u32 %v1871, %v1872
      %vm1874 = vcmp.lt.s32.totalorder %v1855, 1
      %vm1875 = vcmp.lt.s32.totalorder %v1855, 2
      %vm1876 = vcmp.lt.s32.totalorder %v1855, 3
      %vm1877 = vcmp.lt.s32.totalorder %v1855, 4
      %v1878 = vsel %vm1874, %v1858, %v1861
      %v1879 = vsel %vm1877, %v1867, 2102212464
      %v1880 = vsel %vm1876, %v1864, %v1879
      %v1881 = vsel %vm1875, %v1878, %v1880
      %v1882 = vsel %vm1874, %v1861, %v1864
      %v1883 = vsel %vm1877, %v1870, 920167782
      %v1884 = vsel %vm1876, %v1867, %v1883
      %v1885 = vsel %vm1875, %v1882, %v1884
      %v1886 = vsel %vm1874, %v1864, %v1867
      %v1887 = vsel %vm1877, %v1873, 1326507024
      %v1888 = vsel %vm1876, %v1870, %v1887
      %v1889 = vsel %vm1875, %v1886, %v1888
      %v1890 = vshll.u32 %v1850, 8
      %v1891 = vand.u32 %v1890, 65535
      %v1892 = vshrl.u32 %v1890, 16
      %v1893 = vand.u32 %v1889, 65535
      %v1894 = vshrl.u32 %v1889, 16
      %v1895 = vmul.u32 %v1891, %v1893
      %v1896 = vmul.u32 %v1891, %v1894
      %v1897 = vmul.u32 %v1892, %v1893
      %v1898 = vmul.u32 %v1892, %v1894
      %v1899 = vshll.u32 %v1896, 16
      %v1900 = vshrl.u32 %v1896, 16
      %v1901 = vshll.u32 %v1897, 16
      %v1902 = vshrl.u32 %v1897, 16
      %vm1903 = vc.u32 %v1895, %v1899
      %v1904 = vsel %vm1903, 1, 0
      %v1905 = vadd.s32 %v1895, %v1899
      %v1906 = vadd.s32 %v1898, %v1904
      %vm1907 = vc.u32 %v1905, %v1901
      %v1908 = vsel %vm1907, 1, 0
      %v1909 = vadd.s32 %v1905, %v1901
      %v1910 = vadd.s32 %v1906, %v1908
      %v1911 = vadd.s32 %v1910, %v1900
      %v1912 = vadd.s32 %v1911, %v1902
      %v1913 = vand.u32 %v1890, 65535
      %v1914 = vshrl.u32 %v1890, 16
      %v1915 = vand.u32 %v1885, 65535
      %v1916 = vshrl.u32 %v1885, 16
      %v1917 = vmul.u32 %v1913, %v1915
      %v1918 = vmul.u32 %v1913, %v1916
      %v1919 = vmul.u32 %v1914, %v1915
      %v1920 = vmul.u32 %v1914, %v1916
      %v1921 = vshll.u32 %v1918, 16
      %v1922 = vshrl.u32 %v1918, 16
      %v1923 = vshll.u32 %v1919, 16
      %v1924 = vshrl.u32 %v1919, 16
      %vm1925 = vc.u32 %v1917, %v1921
      %v1926 = vsel %vm1925, 1, 0
      %v1927 = vadd.s32 %v1917, %v1921
      %v1928 = vadd.s32 %v1920, %v1926
      %vm1929 = vc.u32 %v1927, %v1923
      %v1930 = vsel %vm1929, 1, 0
      %v1931 = vadd.s32 %v1927, %v1923
      %v1932 = vadd.s32 %v1928, %v1930
      %v1933 = vadd.s32 %v1932, %v1922
      %v1934 = vadd.s32 %v1933, %v1924
      %v1935 = vmul.u32 %v1890, %v1881
      %v1936 = vadd.s32 %v1912, %v1931
      %vm1937 = vc.u32 %v1912, %v1931
      %v1938 = vadd.s32 %v1934, 1
      %v1939 = vsel %vm1937, %v1938, %v1934
      %v1940 = vadd.s32 %v1935, %v1939
      %v1941 = vadd.s32 %v1940, 536870912
      %v1942 = vshrl.u32 %v1941, 30
      %v1943 = vshll.u32 %v1942, 30
      %v1944 = vsub.s32 %v1940, %v1943
      %vm1945 = vcmp.lt.s32.totalorder %v1944, 0
      %v1946 = vsub.s32 0, %v1944
      %v1947 = vsel %vm1945, %v1946, %v1944
      %v1948 = vclz %v1947
      %v1949 = vsub.s32 %v1948, 2
      %vm1950 = vcmp.gt.s32.totalorder 0, %v1949
      %v1951 = vsel %vm1950, 0, %v1949
      %v1952 = vsub.s32 32, %v1951
      %v1953 = vshll.u32 %v1944, %v1951
      %v1954 = vshrl.u32 %v1936, %v1952
      %v1955 = vor.u32 %v1953, %v1954
      %v1956 = vsub.s32 4294967266, %v1951
      %v1957 = vadd.s32 %v1956, 127
      %v1958 = vshll.u32 %v1957, 23
      %v1959 = vor.u32 4788187, %v1958
      %v1960 = vand.u32 2147483647, %v1959
      %v1962 = vcvt.s32.f32 %v1955
      %v1963 = vmul.f32 %v1962, %v1960
      %v1964 = vxor.u32 %v1963, 2147483648
      %v1965 = vsel %vm1844, %v1964, %v1963
      %v1966 = vsub.s32 4, %v1942
      %v1967 = vsel %vm1844, %v1966, %v1942
      %v1968 = vsel %vm1843, %v427, %v1965
      %v1969 = vsel %vm1843, 0, %v1967
      %v1970 = vmul.f32 %v1968, %v1968
      %v1971 = vmul.f32 %v1970, -0.001358992
      %v1972 = vadd.f32 %v1971, 0.041655596
      %v1973 = vmul.f32 %v1970, %v1972
      %v1974 = vadd.f32 %v1973, -0.4999988
      %v1975 = vmul.f32 %v1970, %v1974
      %v1976 = vadd.f32 1.0, %v1975
      %v1977 = vmul.f32 %v1968, %v1968
      %v1978 = vmul.f32 %v1977, -0.00019511016
      %v1979 = vadd.f32 %v1978, 0.008332121
      %v1980 = vmul.f32 %v1977, %v1979
      %v1981 = vadd.f32 %v1980, -0.16666654
      %v1982 = vmul.f32 %v1977, %v1981
      %v1983 = vadd.f32 %v1982, 1.0
      %v1984 = vmul.f32 %v1983, %v1968
      %vm1985 = vweird.f32 %v427
      %v1986 = vadd.s32 %v1969, 3
      %v1987 = vand.u32 %v1986, 3
      %vm1988 = vcmp.lt.s32.totalorder %v1987, 2
      %vm1989 = vcmp.eq.s32.totalorder %v1987, 0
      %v1990 = vxor.u32 %v1984, 2147483648
      %v1991 = vsel %vm1989, %v1976, %v1990
      %vm1992 = vcmp.eq.s32.totalorder %v1987, 2
      %v1993 = vxor.u32 %v1976, 2147483648
      %v1994 = vsel %vm1992, %v1993, %v1984
      %v1995 = vsel %vm1988, %v1991, %v1994
      %v1996 = vsel %vm1985, nan, %v1995
      %v1997 = vand.u32 2147483647, %v430
      %vm1998 = vcmp.le.f32.partialorder %v1997, 0.7853982
      %vm1999 = vcmp.lt.s32.totalorder %v430, 0
      %v2000 = vand.u32 %v430, 2139095040
      %v2001 = vshrl.u32 %v2000, 23
      %v2002 = vsub.s32 %v2001, 127
      %v2003 = vand.u32 2147483647, %v430
      %v2004 = vand.u32 %v2003, 8388607
      %v2005 = vor.u32 %v2004, 8388608
      %v2006 = vsub.s32 0, %v2005
      %v2007 = vadd.s32 %v2002, 1
      %vm2008 = vcmp.gt.s32.totalorder %v2007, 0
      %v2009 = vsel %vm2008, %v2007, 0
      %v2010 = vshrl.u32 %v2009, 5
      %v2011 = vand.u32 %v2009, 31
      %v2012 = vsub.s32 32, %v2011
      %v2013 = vshrl.u32 683565275, %v2012
      %v2014 = vshll.u32 683565275, %v2011
      %v2015 = vshrl.u32 2475754826, %v2012
      %v2016 = vor.u32 %v2014, %v2015
      %v2017 = vshll.u32 2475754826, %v2011
      %v2018 = vshrl.u32 2131351028, %v2012
      %v2019 = vor.u32 %v2017, %v2018
      %v2020 = vshll.u32 2131351028, %v2011
      %v2021 = vshrl.u32 2102212464, %v2012
      %v2022 = vor.u32 %v2020, %v2021
      %v2023 = vshll.u32 2102212464, %v2011
      %v2024 = vshrl.u32 920167782, %v2012
      %v2025 = vor.u32 %v2023, %v2024
      %v2026 = vshll.u32 920167782, %v2011
      %v2027 = vshrl.u32 1326507024, %v2012
      %v2028 = vor.u32 %v2026, %v2027
      %vm2029 = vcmp.lt.s32.totalorder %v2010, 1
      %vm2030 = vcmp.lt.s32.totalorder %v2010, 2
      %vm2031 = vcmp.lt.s32.totalorder %v2010, 3
      %vm2032 = vcmp.lt.s32.totalorder %v2010, 4
      %v2033 = vsel %vm2029, %v2013, %v2016
      %v2034 = vsel %vm2032, %v2022, 2102212464
      %v2035 = vsel %vm2031, %v2019, %v2034
      %v2036 = vsel %vm2030, %v2033, %v2035
      %v2037 = vsel %vm2029, %v2016, %v2019
      %v2038 = vsel %vm2032, %v2025, 920167782
      %v2039 = vsel %vm2031, %v2022, %v2038
      %v2040 = vsel %vm2030, %v2037, %v2039
      %v2041 = vsel %vm2029, %v2019, %v2022
      %v2042 = vsel %vm2032, %v2028, 1326507024
      %v2043 = vsel %vm2031, %v2025, %v2042
      %v2044 = vsel %vm2030, %v2041, %v2043
      %v2045 = vshll.u32 %v2005, 8
      %v2046 = vand.u32 %v2045, 65535
      %v2047 = vshrl.u32 %v2045, 16
      %v2048 = vand.u32 %v2044, 65535
      %v2049 = vshrl.u32 %v2044, 16
      %v2050 = vmul.u32 %v2046, %v2048
      %v2051 = vmul.u32 %v2046, %v2049
      %v2052 = vmul.u32 %v2047, %v2048
      %v2053 = vmul.u32 %v2047, %v2049
      %v2054 = vshll.u32 %v2051, 16
      %v2055 = vshrl.u32 %v2051, 16
      %v2056 = vshll.u32 %v2052, 16
      %v2057 = vshrl.u32 %v2052, 16
      %vm2058 = vc.u32 %v2050, %v2054
      %v2059 = vsel %vm2058, 1, 0
      %v2060 = vadd.s32 %v2050, %v2054
      %v2061 = vadd.s32 %v2053, %v2059
      %vm2062 = vc.u32 %v2060, %v2056
      %v2063 = vsel %vm2062, 1, 0
      %v2064 = vadd.s32 %v2060, %v2056
      %v2065 = vadd.s32 %v2061, %v2063
      %v2066 = vadd.s32 %v2065, %v2055
      %v2067 = vadd.s32 %v2066, %v2057
      %v2068 = vand.u32 %v2045, 65535
      %v2069 = vshrl.u32 %v2045, 16
      %v2070 = vand.u32 %v2040, 65535
      %v2071 = vshrl.u32 %v2040, 16
      %v2072 = vmul.u32 %v2068, %v2070
      %v2073 = vmul.u32 %v2068, %v2071
      %v2074 = vmul.u32 %v2069, %v2070
      %v2075 = vmul.u32 %v2069, %v2071
      %v2076 = vshll.u32 %v2073, 16
      %v2077 = vshrl.u32 %v2073, 16
      %v2078 = vshll.u32 %v2074, 16
      %v2079 = vshrl.u32 %v2074, 16
      %vm2080 = vc.u32 %v2072, %v2076
      %v2081 = vsel %vm2080, 1, 0
      %v2082 = vadd.s32 %v2072, %v2076
      %v2083 = vadd.s32 %v2075, %v2081
      %vm2084 = vc.u32 %v2082, %v2078
      %v2085 = vsel %vm2084, 1, 0
      %v2086 = vadd.s32 %v2082, %v2078
      %v2087 = vadd.s32 %v2083, %v2085
      %v2088 = vadd.s32 %v2087, %v2077
      %v2089 = vadd.s32 %v2088, %v2079
      %v2090 = vmul.u32 %v2045, %v2036
      %v2091 = vadd.s32 %v2067, %v2086
      %vm2092 = vc.u32 %v2067, %v2086
      %v2093 = vadd.s32 %v2089, 1
      %v2094 = vsel %vm2092, %v2093, %v2089
      %v2095 = vadd.s32 %v2090, %v2094
      %v2096 = vadd.s32 %v2095, 536870912
      %v2097 = vshrl.u32 %v2096, 30
      %v2098 = vshll.u32 %v2097, 30
      %v2099 = vsub.s32 %v2095, %v2098
      %vm2100 = vcmp.lt.s32.totalorder %v2099, 0
      %v2101 = vsub.s32 0, %v2099
      %v2102 = vsel %vm2100, %v2101, %v2099
      %v2103 = vclz %v2102
      %v2104 = vsub.s32 %v2103, 2
      %vm2105 = vcmp.gt.s32.totalorder 0, %v2104
      %v2106 = vsel %vm2105, 0, %v2104
      %v2107 = vsub.s32 32, %v2106
      %v2108 = vshll.u32 %v2099, %v2106
      %v2109 = vshrl.u32 %v2091, %v2107
      %v2110 = vor.u32 %v2108, %v2109
      %v2111 = vsub.s32 4294967266, %v2106
      %v2112 = vadd.s32 %v2111, 127
      %v2113 = vshll.u32 %v2112, 23
      %v2114 = vor.u32 4788187, %v2113
      %v2115 = vand.u32 2147483647, %v2114
      %v2117 = vcvt.s32.f32 %v2110
      %v2118 = vmul.f32 %v2117, %v2115
      %v2119 = vxor.u32 %v2118, 2147483648
      %v2120 = vsel %vm1999, %v2119, %v2118
      %v2121 = vsub.s32 4, %v2097
      %v2122 = vsel %vm1999, %v2121, %v2097
      %v2123 = vsel %vm1998, %v430, %v2120
      %v2124 = vsel %vm1998, 0, %v2122
      %v2125 = vmul.f32 %v2123, %v2123
      %v2126 = vmul.f32 %v2125, -0.001358992
      %v2127 = vadd.f32 %v2126, 0.041655596
      %v2128 = vmul.f32 %v2125, %v2127
      %v2129 = vadd.f32 %v2128, -0.4999988
      %v2130 = vmul.f32 %v2125, %v2129
      %v2131 = vadd.f32 1.0, %v2130
      %v2132 = vmul.f32 %v2123, %v2123
      %v2133 = vmul.f32 %v2132, -0.00019511016
      %v2134 = vadd.f32 %v2133, 0.008332121
      %v2135 = vmul.f32 %v2132, %v2134
      %v2136 = vadd.f32 %v2135, -0.16666654
      %v2137 = vmul.f32 %v2132, %v2136
      %v2138 = vadd.f32 %v2137, 1.0
      %v2139 = vmul.f32 %v2138, %v2123
      %vm2140 = vweird.f32 %v430
      %v2141 = vadd.s32 %v2124, 3
      %v2142 = vand.u32 %v2141, 3
      %vm2143 = vcmp.lt.s32.totalorder %v2142, 2
      %vm2144 = vcmp.eq.s32.totalorder %v2142, 0
      %v2145 = vxor.u32 %v2139, 2147483648
      %v2146 = vsel %vm2144, %v2131, %v2145
      %vm2147 = vcmp.eq.s32.totalorder %v2142, 2
      %v2148 = vxor.u32 %v2131, 2147483648
      %v2149 = vsel %vm2147, %v2148, %v2139
      %v2150 = vsel %vm2143, %v2146, %v2149
      %v2151 = vsel %vm2140, nan, %v2150
      %v2152 = vand.u32 2147483647, %v433
      %vm2153 = vcmp.le.f32.partialorder %v2152, 0.7853982
      %vm2154 = vcmp.lt.s32.totalorder %v433, 0
      %v2155 = vand.u32 %v433, 2139095040
      %v2156 = vshrl.u32 %v2155, 23
      %v2157 = vsub.s32 %v2156, 127
      %v2158 = vand.u32 2147483647, %v433
      %v2159 = vand.u32 %v2158, 8388607
      %v2160 = vor.u32 %v2159, 8388608
      %v2161 = vsub.s32 0, %v2160
      %v2162 = vadd.s32 %v2157, 1
      %vm2163 = vcmp.gt.s32.totalorder %v2162, 0
      %v2164 = vsel %vm2163, %v2162, 0
      %v2165 = vshrl.u32 %v2164, 5
      %v2166 = vand.u32 %v2164, 31
      %v2167 = vsub.s32 32, %v2166
      %v2168 = vshrl.u32 683565275, %v2167
      %v2169 = vshll.u32 683565275, %v2166
      %v2170 = vshrl.u32 2475754826, %v2167
      %v2171 = vor.u32 %v2169, %v2170
      %v2172 = vshll.u32 2475754826, %v2166
      %v2173 = vshrl.u32 2131351028, %v2167
      %v2174 = vor.u32 %v2172, %v2173
      %v2175 = vshll.u32 2131351028, %v2166
      %v2176 = vshrl.u32 2102212464, %v2167
      %v2177 = vor.u32 %v2175, %v2176
      %v2178 = vshll.u32 2102212464, %v2166
      %v2179 = vshrl.u32 920167782, %v2167
      %v2180 = vor.u32 %v2178, %v2179
      %v2181 = vshll.u32 920167782, %v2166
      %v2182 = vshrl.u32 1326507024, %v2167
      %v2183 = vor.u32 %v2181, %v2182
      %vm2184 = vcmp.lt.s32.totalorder %v2165, 1
      %vm2185 = vcmp.lt.s32.totalorder %v2165, 2
      %vm2186 = vcmp.lt.s32.totalorder %v2165, 3
      %vm2187 = vcmp.lt.s32.totalorder %v2165, 4
      %v2188 = vsel %vm2184, %v2168, %v2171
      %v2189 = vsel %vm2187, %v2177, 2102212464
      %v2190 = vsel %vm2186, %v2174, %v2189
      %v2191 = vsel %vm2185, %v2188, %v2190
      %v2192 = vsel %vm2184, %v2171, %v2174
      %v2193 = vsel %vm2187, %v2180, 920167782
      %v2194 = vsel %vm2186, %v2177, %v2193
      %v2195 = vsel %vm2185, %v2192, %v2194
      %v2196 = vsel %vm2184, %v2174, %v2177
      %v2197 = vsel %vm2187, %v2183, 1326507024
      %v2198 = vsel %vm2186, %v2180, %v2197
      %v2199 = vsel %vm2185, %v2196, %v2198
      %v2200 = vshll.u32 %v2160, 8
      %v2201 = vand.u32 %v2200, 65535
      %v2202 = vshrl.u32 %v2200, 16
      %v2203 = vand.u32 %v2199, 65535
      %v2204 = vshrl.u32 %v2199, 16
      %v2205 = vmul.u32 %v2201, %v2203
      %v2206 = vmul.u32 %v2201, %v2204
      %v2207 = vmul.u32 %v2202, %v2203
      %v2208 = vmul.u32 %v2202, %v2204
      %v2209 = vshll.u32 %v2206, 16
      %v2210 = vshrl.u32 %v2206, 16
      %v2211 = vshll.u32 %v2207, 16
      %v2212 = vshrl.u32 %v2207, 16
      %vm2213 = vc.u32 %v2205, %v2209
      %v2214 = vsel %vm2213, 1, 0
      %v2215 = vadd.s32 %v2205, %v2209
      %v2216 = vadd.s32 %v2208, %v2214
      %vm2217 = vc.u32 %v2215, %v2211
      %v2218 = vsel %vm2217, 1, 0
      %v2219 = vadd.s32 %v2215, %v2211
      %v2220 = vadd.s32 %v2216, %v2218
      %v2221 = vadd.s32 %v2220, %v2210
      %v2222 = vadd.s32 %v2221, %v2212
      %v2223 = vand.u32 %v2200, 65535
      %v2224 = vshrl.u32 %v2200, 16
      %v2225 = vand.u32 %v2195, 65535
      %v2226 = vshrl.u32 %v2195, 16
      %v2227 = vmul.u32 %v2223, %v2225
      %v2228 = vmul.u32 %v2223, %v2226
      %v2229 = vmul.u32 %v2224, %v2225
      %v2230 = vmul.u32 %v2224, %v2226
      %v2231 = vshll.u32 %v2228, 16
      %v2232 = vshrl.u32 %v2228, 16
      %v2233 = vshll.u32 %v2229, 16
      %v2234 = vshrl.u32 %v2229, 16
      %vm2235 = vc.u32 %v2227, %v2231
      %v2236 = vsel %vm2235, 1, 0
      %v2237 = vadd.s32 %v2227, %v2231
      %v2238 = vadd.s32 %v2230, %v2236
      %vm2239 = vc.u32 %v2237, %v2233
      %v2240 = vsel %vm2239, 1, 0
      %v2241 = vadd.s32 %v2237, %v2233
      %v2242 = vadd.s32 %v2238, %v2240
      %v2243 = vadd.s32 %v2242, %v2232
      %v2244 = vadd.s32 %v2243, %v2234
      %v2245 = vmul.u32 %v2200, %v2191
      %v2246 = vadd.s32 %v2222, %v2241
      %vm2247 = vc.u32 %v2222, %v2241
      %v2248 = vadd.s32 %v2244, 1
      %v2249 = vsel %vm2247, %v2248, %v2244
      %v2250 = vadd.s32 %v2245, %v2249
      %v2251 = vadd.s32 %v2250, 536870912
      %v2252 = vshrl.u32 %v2251, 30
      %v2253 = vshll.u32 %v2252, 30
      %v2254 = vsub.s32 %v2250, %v2253
      %vm2255 = vcmp.lt.s32.totalorder %v2254, 0
      %v2256 = vsub.s32 0, %v2254
      %v2257 = vsel %vm2255, %v2256, %v2254
      %v2258 = vclz %v2257
      %v2259 = vsub.s32 %v2258, 2
      %vm2260 = vcmp.gt.s32.totalorder 0, %v2259
      %v2261 = vsel %vm2260, 0, %v2259
      %v2262 = vsub.s32 32, %v2261
      %v2263 = vshll.u32 %v2254, %v2261
      %v2264 = vshrl.u32 %v2246, %v2262
      %v2265 = vor.u32 %v2263, %v2264
      %v2266 = vsub.s32 4294967266, %v2261
      %v2267 = vadd.s32 %v2266, 127
      %v2268 = vshll.u32 %v2267, 23
      %v2269 = vor.u32 4788187, %v2268
      %v2270 = vand.u32 2147483647, %v2269
      %v2272 = vcvt.s32.f32 %v2265
      %v2273 = vmul.f32 %v2272, %v2270
      %v2274 = vxor.u32 %v2273, 2147483648
      %v2275 = vsel %vm2154, %v2274, %v2273
      %v2276 = vsub.s32 4, %v2252
      %v2277 = vsel %vm2154, %v2276, %v2252
      %v2278 = vsel %vm2153, %v433, %v2275
      %v2279 = vsel %vm2153, 0, %v2277
      %v2280 = vmul.f32 %v2278, %v2278
      %v2281 = vmul.f32 %v2280, -0.001358992
      %v2282 = vadd.f32 %v2281, 0.041655596
      %v2283 = vmul.f32 %v2280, %v2282
      %v2284 = vadd.f32 %v2283, -0.4999988
      %v2285 = vmul.f32 %v2280, %v2284
      %v2286 = vadd.f32 1.0, %v2285
      %v2287 = vmul.f32 %v2278, %v2278
      %v2288 = vmul.f32 %v2287, -0.00019511016
      %v2289 = vadd.f32 %v2288, 0.008332121
      %v2290 = vmul.f32 %v2287, %v2289
      %v2291 = vadd.f32 %v2290, -0.16666654
      %v2292 = vmul.f32 %v2287, %v2291
      %v2293 = vadd.f32 %v2292, 1.0
      %v2294 = vmul.f32 %v2293, %v2278
      %vm2295 = vweird.f32 %v433
      %v2296 = vadd.s32 %v2279, 3
      %v2297 = vand.u32 %v2296, 3
      %vm2298 = vcmp.lt.s32.totalorder %v2297, 2
      %vm2299 = vcmp.eq.s32.totalorder %v2297, 0
      %v2300 = vxor.u32 %v2294, 2147483648
      %v2301 = vsel %vm2299, %v2286, %v2300
      %vm2302 = vcmp.eq.s32.totalorder %v2297, 2
      %v2303 = vxor.u32 %v2286, 2147483648
      %v2304 = vsel %vm2302, %v2303, %v2294
      %v2305 = vsel %vm2298, %v2301, %v2304
      %v2306 = vsel %vm2295, nan, %v2305
      %v2307 = vand.u32 2147483647, %v436
      %vm2308 = vcmp.le.f32.partialorder %v2307, 0.7853982
      %vm2309 = vcmp.lt.s32.totalorder %v436, 0
      %v2310 = vand.u32 %v436, 2139095040
      %v2311 = vshrl.u32 %v2310, 23
      %v2312 = vsub.s32 %v2311, 127
      %v2313 = vand.u32 2147483647, %v436
      %v2314 = vand.u32 %v2313, 8388607
      %v2315 = vor.u32 %v2314, 8388608
      %v2316 = vsub.s32 0, %v2315
      %v2317 = vadd.s32 %v2312, 1
      %vm2318 = vcmp.gt.s32.totalorder %v2317, 0
      %v2319 = vsel %vm2318, %v2317, 0
      %v2320 = vshrl.u32 %v2319, 5
      %v2321 = vand.u32 %v2319, 31
      %v2322 = vsub.s32 32, %v2321
      %v2323 = vshrl.u32 683565275, %v2322
      %v2324 = vshll.u32 683565275, %v2321
      %v2325 = vshrl.u32 2475754826, %v2322
      %v2326 = vor.u32 %v2324, %v2325
      %v2327 = vshll.u32 2475754826, %v2321
      %v2328 = vshrl.u32 2131351028, %v2322
      %v2329 = vor.u32 %v2327, %v2328
      %v2330 = vshll.u32 2131351028, %v2321
      %v2331 = vshrl.u32 2102212464, %v2322
      %v2332 = vor.u32 %v2330, %v2331
      %v2333 = vshll.u32 2102212464, %v2321
      %v2334 = vshrl.u32 920167782, %v2322
      %v2335 = vor.u32 %v2333, %v2334
      %v2336 = vshll.u32 920167782, %v2321
      %v2337 = vshrl.u32 1326507024, %v2322
      %v2338 = vor.u32 %v2336, %v2337
      %vm2339 = vcmp.lt.s32.totalorder %v2320, 1
      %vm2340 = vcmp.lt.s32.totalorder %v2320, 2
      %vm2341 = vcmp.lt.s32.totalorder %v2320, 3
      %vm2342 = vcmp.lt.s32.totalorder %v2320, 4
      %v2343 = vsel %vm2339, %v2323, %v2326
      %v2344 = vsel %vm2342, %v2332, 2102212464
      %v2345 = vsel %vm2341, %v2329, %v2344
      %v2346 = vsel %vm2340, %v2343, %v2345
      %v2347 = vsel %vm2339, %v2326, %v2329
      %v2348 = vsel %vm2342, %v2335, 920167782
      %v2349 = vsel %vm2341, %v2332, %v2348
      %v2350 = vsel %vm2340, %v2347, %v2349
      %v2351 = vsel %vm2339, %v2329, %v2332
      %v2352 = vsel %vm2342, %v2338, 1326507024
      %v2353 = vsel %vm2341, %v2335, %v2352
      %v2354 = vsel %vm2340, %v2351, %v2353
      %v2355 = vshll.u32 %v2315, 8
      %v2356 = vand.u32 %v2355, 65535
      %v2357 = vshrl.u32 %v2355, 16
      %v2358 = vand.u32 %v2354, 65535
      %v2359 = vshrl.u32 %v2354, 16
      %v2360 = vmul.u32 %v2356, %v2358
      %v2361 = vmul.u32 %v2356, %v2359
      %v2362 = vmul.u32 %v2357, %v2358
      %v2363 = vmul.u32 %v2357, %v2359
      %v2364 = vshll.u32 %v2361, 16
      %v2365 = vshrl.u32 %v2361, 16
      %v2366 = vshll.u32 %v2362, 16
      %v2367 = vshrl.u32 %v2362, 16
      %vm2368 = vc.u32 %v2360, %v2364
      %v2369 = vsel %vm2368, 1, 0
      %v2370 = vadd.s32 %v2360, %v2364
      %v2371 = vadd.s32 %v2363, %v2369
      %vm2372 = vc.u32 %v2370, %v2366
      %v2373 = vsel %vm2372, 1, 0
      %v2374 = vadd.s32 %v2370, %v2366
      %v2375 = vadd.s32 %v2371, %v2373
      %v2376 = vadd.s32 %v2375, %v2365
      %v2377 = vadd.s32 %v2376, %v2367
      %v2378 = vand.u32 %v2355, 65535
      %v2379 = vshrl.u32 %v2355, 16
      %v2380 = vand.u32 %v2350, 65535
      %v2381 = vshrl.u32 %v2350, 16
      %v2382 = vmul.u32 %v2378, %v2380
      %v2383 = vmul.u32 %v2378, %v2381
      %v2384 = vmul.u32 %v2379, %v2380
      %v2385 = vmul.u32 %v2379, %v2381
      %v2386 = vshll.u32 %v2383, 16
      %v2387 = vshrl.u32 %v2383, 16
      %v2388 = vshll.u32 %v2384, 16
      %v2389 = vshrl.u32 %v2384, 16
      %vm2390 = vc.u32 %v2382, %v2386
      %v2391 = vsel %vm2390, 1, 0
      %v2392 = vadd.s32 %v2382, %v2386
      %v2393 = vadd.s32 %v2385, %v2391
      %vm2394 = vc.u32 %v2392, %v2388
      %v2395 = vsel %vm2394, 1, 0
      %v2396 = vadd.s32 %v2392, %v2388
      %v2397 = vadd.s32 %v2393, %v2395
      %v2398 = vadd.s32 %v2397, %v2387
      %v2399 = vadd.s32 %v2398, %v2389
      %v2400 = vmul.u32 %v2355, %v2346
      %v2401 = vadd.s32 %v2377, %v2396
      %vm2402 = vc.u32 %v2377, %v2396
      %v2403 = vadd.s32 %v2399, 1
      %v2404 = vsel %vm2402, %v2403, %v2399
      %v2405 = vadd.s32 %v2400, %v2404
      %v2406 = vadd.s32 %v2405, 536870912
      %v2407 = vshrl.u32 %v2406, 30
      %v2408 = vshll.u32 %v2407, 30
      %v2409 = vsub.s32 %v2405, %v2408
      %vm2410 = vcmp.lt.s32.totalorder %v2409, 0
      %v2411 = vsub.s32 0, %v2409
      %v2412 = vsel %vm2410, %v2411, %v2409
      %v2413 = vclz %v2412
      %v2414 = vsub.s32 %v2413, 2
      %vm2415 = vcmp.gt.s32.totalorder 0, %v2414
      %v2416 = vsel %vm2415, 0, %v2414
      %v2417 = vsub.s32 32, %v2416
      %v2418 = vshll.u32 %v2409, %v2416
      %v2419 = vshrl.u32 %v2401, %v2417
      %v2420 = vor.u32 %v2418, %v2419
      %v2421 = vsub.s32 4294967266, %v2416
      %v2422 = vadd.s32 %v2421, 127
      %v2423 = vshll.u32 %v2422, 23
      %v2424 = vor.u32 4788187, %v2423
      %v2425 = vand.u32 2147483647, %v2424
      %v2427 = vcvt.s32.f32 %v2420
      %v2428 = vmul.f32 %v2427, %v2425
      %v2429 = vxor.u32 %v2428, 2147483648
      %v2430 = vsel %vm2309, %v2429, %v2428
      %v2431 = vsub.s32 4, %v2407
      %v2432 = vsel %vm2309, %v2431, %v2407
      %v2433 = vsel %vm2308, %v436, %v2430
      %v2434 = vsel %vm2308, 0, %v2432
      %v2435 = vmul.f32 %v2433, %v2433
      %v2436 = vmul.f32 %v2435, -0.001358992
      %v2437 = vadd.f32 %v2436, 0.041655596
      %v2438 = vmul.f32 %v2435, %v2437
      %v2439 = vadd.f32 %v2438, -0.4999988
      %v2440 = vmul.f32 %v2435, %v2439
      %v2441 = vadd.f32 1.0, %v2440
      %v2442 = vmul.f32 %v2433, %v2433
      %v2443 = vmul.f32 %v2442, -0.00019511016
      %v2444 = vadd.f32 %v2443, 0.008332121
      %v2445 = vmul.f32 %v2442, %v2444
      %v2446 = vadd.f32 %v2445, -0.16666654
      %v2447 = vmul.f32 %v2442, %v2446
      %v2448 = vadd.f32 %v2447, 1.0
      %v2449 = vmul.f32 %v2448, %v2433
      %vm2450 = vweird.f32 %v436
      %v2451 = vadd.s32 %v2434, 3
      %v2452 = vand.u32 %v2451, 3
      %vm2453 = vcmp.lt.s32.totalorder %v2452, 2
      %vm2454 = vcmp.eq.s32.totalorder %v2452, 0
      %v2455 = vxor.u32 %v2449, 2147483648
      %v2456 = vsel %vm2454, %v2441, %v2455
      %vm2457 = vcmp.eq.s32.totalorder %v2452, 2
      %v2458 = vxor.u32 %v2441, 2147483648
      %v2459 = vsel %vm2457, %v2458, %v2449
      %v2460 = vsel %vm2453, %v2456, %v2459
      %v2461 = vsel %vm2450, nan, %v2460
      %v2462 = vand.u32 2147483647, %v439
      %vm2463 = vcmp.le.f32.partialorder %v2462, 0.7853982
      %vm2464 = vcmp.lt.s32.totalorder %v439, 0
      %v2465 = vand.u32 %v439, 2139095040
      %v2466 = vshrl.u32 %v2465, 23
      %v2467 = vsub.s32 %v2466, 127
      %v2468 = vand.u32 2147483647, %v439
      %v2469 = vand.u32 %v2468, 8388607
      %v2470 = vor.u32 %v2469, 8388608
      %v2471 = vsub.s32 0, %v2470
      %v2472 = vadd.s32 %v2467, 1
      %vm2473 = vcmp.gt.s32.totalorder %v2472, 0
      %v2474 = vsel %vm2473, %v2472, 0
      %v2475 = vshrl.u32 %v2474, 5
      %v2476 = vand.u32 %v2474, 31
      %v2477 = vsub.s32 32, %v2476
      %v2478 = vshrl.u32 683565275, %v2477
      %v2479 = vshll.u32 683565275, %v2476
      %v2480 = vshrl.u32 2475754826, %v2477
      %v2481 = vor.u32 %v2479, %v2480
      %v2482 = vshll.u32 2475754826, %v2476
      %v2483 = vshrl.u32 2131351028, %v2477
      %v2484 = vor.u32 %v2482, %v2483
      %v2485 = vshll.u32 2131351028, %v2476
      %v2486 = vshrl.u32 2102212464, %v2477
      %v2487 = vor.u32 %v2485, %v2486
      %v2488 = vshll.u32 2102212464, %v2476
      %v2489 = vshrl.u32 920167782, %v2477
      %v2490 = vor.u32 %v2488, %v2489
      %v2491 = vshll.u32 920167782, %v2476
      %v2492 = vshrl.u32 1326507024, %v2477
      %v2493 = vor.u32 %v2491, %v2492
      %vm2494 = vcmp.lt.s32.totalorder %v2475, 1
      %vm2495 = vcmp.lt.s32.totalorder %v2475, 2
      %vm2496 = vcmp.lt.s32.totalorder %v2475, 3
      %vm2497 = vcmp.lt.s32.totalorder %v2475, 4
      %v2498 = vsel %vm2494, %v2478, %v2481
      %v2499 = vsel %vm2497, %v2487, 2102212464
      %v2500 = vsel %vm2496, %v2484, %v2499
      %v2501 = vsel %vm2495, %v2498, %v2500
      %v2502 = vsel %vm2494, %v2481, %v2484
      %v2503 = vsel %vm2497, %v2490, 920167782
      %v2504 = vsel %vm2496, %v2487, %v2503
      %v2505 = vsel %vm2495, %v2502, %v2504
      %v2506 = vsel %vm2494, %v2484, %v2487
      %v2507 = vsel %vm2497, %v2493, 1326507024
      %v2508 = vsel %vm2496, %v2490, %v2507
      %v2509 = vsel %vm2495, %v2506, %v2508
      %v2510 = vshll.u32 %v2470, 8
      %v2511 = vand.u32 %v2510, 65535
      %v2512 = vshrl.u32 %v2510, 16
      %v2513 = vand.u32 %v2509, 65535
      %v2514 = vshrl.u32 %v2509, 16
      %v2515 = vmul.u32 %v2511, %v2513
      %v2516 = vmul.u32 %v2511, %v2514
      %v2517 = vmul.u32 %v2512, %v2513
      %v2518 = vmul.u32 %v2512, %v2514
      %v2519 = vshll.u32 %v2516, 16
      %v2520 = vshrl.u32 %v2516, 16
      %v2521 = vshll.u32 %v2517, 16
      %v2522 = vshrl.u32 %v2517, 16
      %vm2523 = vc.u32 %v2515, %v2519
      %v2524 = vsel %vm2523, 1, 0
      %v2525 = vadd.s32 %v2515, %v2519
      %v2526 = vadd.s32 %v2518, %v2524
      %vm2527 = vc.u32 %v2525, %v2521
      %v2528 = vsel %vm2527, 1, 0
      %v2529 = vadd.s32 %v2525, %v2521
      %v2530 = vadd.s32 %v2526, %v2528
      %v2531 = vadd.s32 %v2530, %v2520
      %v2532 = vadd.s32 %v2531, %v2522
      %v2533 = vand.u32 %v2510, 65535
      %v2534 = vshrl.u32 %v2510, 16
      %v2535 = vand.u32 %v2505, 65535
      %v2536 = vshrl.u32 %v2505, 16
      %v2537 = vmul.u32 %v2533, %v2535
      %v2538 = vmul.u32 %v2533, %v2536
      %v2539 = vmul.u32 %v2534, %v2535
      %v2540 = vmul.u32 %v2534, %v2536
      %v2541 = vshll.u32 %v2538, 16
      %v2542 = vshrl.u32 %v2538, 16
      %v2543 = vshll.u32 %v2539, 16
      %v2544 = vshrl.u32 %v2539, 16
      %vm2545 = vc.u32 %v2537, %v2541
      %v2546 = vsel %vm2545, 1, 0
      %v2547 = vadd.s32 %v2537, %v2541
      %v2548 = vadd.s32 %v2540, %v2546
      %vm2549 = vc.u32 %v2547, %v2543
      %v2550 = vsel %vm2549, 1, 0
      %v2551 = vadd.s32 %v2547, %v2543
      %v2552 = vadd.s32 %v2548, %v2550
      %v2553 = vadd.s32 %v2552, %v2542
      %v2554 = vadd.s32 %v2553, %v2544
      %v2555 = vmul.u32 %v2510, %v2501
      %v2556 = vadd.s32 %v2532, %v2551
      %vm2557 = vc.u32 %v2532, %v2551
      %v2558 = vadd.s32 %v2554, 1
      %v2559 = vsel %vm2557, %v2558, %v2554
      %v2560 = vadd.s32 %v2555, %v2559
      %v2561 = vadd.s32 %v2560, 536870912
      %v2562 = vshrl.u32 %v2561, 30
      %v2563 = vshll.u32 %v2562, 30
      %v2564 = vsub.s32 %v2560, %v2563
      %vm2565 = vcmp.lt.s32.totalorder %v2564, 0
      %v2566 = vsub.s32 0, %v2564
      %v2567 = vsel %vm2565, %v2566, %v2564
      %v2568 = vclz %v2567
      %v2569 = vsub.s32 %v2568, 2
      %vm2570 = vcmp.gt.s32.totalorder 0, %v2569
      %v2571 = vsel %vm2570, 0, %v2569
      %v2572 = vsub.s32 32, %v2571
      %v2573 = vshll.u32 %v2564, %v2571
      %v2574 = vshrl.u32 %v2556, %v2572
      %v2575 = vor.u32 %v2573, %v2574
      %v2576 = vsub.s32 4294967266, %v2571
      %v2577 = vadd.s32 %v2576, 127
      %v2578 = vshll.u32 %v2577, 23
      %v2579 = vor.u32 4788187, %v2578
      %v2580 = vand.u32 2147483647, %v2579
      %v2582 = vcvt.s32.f32 %v2575
      %v2583 = vmul.f32 %v2582, %v2580
      %v2584 = vxor.u32 %v2583, 2147483648
      %v2585 = vsel %vm2464, %v2584, %v2583
      %v2586 = vsub.s32 4, %v2562
      %v2587 = vsel %vm2464, %v2586, %v2562
      %v2588 = vsel %vm2463, %v439, %v2585
      %v2589 = vsel %vm2463, 0, %v2587
      %v2590 = vmul.f32 %v2588, %v2588
      %v2591 = vmul.f32 %v2590, -0.001358992
      %v2592 = vadd.f32 %v2591, 0.041655596
      %v2593 = vmul.f32 %v2590, %v2592
      %v2594 = vadd.f32 %v2593, -0.4999988
      %v2595 = vmul.f32 %v2590, %v2594
      %v2596 = vadd.f32 1.0, %v2595
      %v2597 = vmul.f32 %v2588, %v2588
      %v2598 = vmul.f32 %v2597, -0.00019511016
      %v2599 = vadd.f32 %v2598, 0.008332121
      %v2600 = vmul.f32 %v2597, %v2599
      %v2601 = vadd.f32 %v2600, -0.16666654
      %v2602 = vmul.f32 %v2597, %v2601
      %v2603 = vadd.f32 %v2602, 1.0
      %v2604 = vmul.f32 %v2603, %v2588
      %vm2605 = vweird.f32 %v439
      %v2606 = vadd.s32 %v2589, 3
      %v2607 = vand.u32 %v2606, 3
      %vm2608 = vcmp.lt.s32.totalorder %v2607, 2
      %vm2609 = vcmp.eq.s32.totalorder %v2607, 0
      %v2610 = vxor.u32 %v2604, 2147483648
      %v2611 = vsel %vm2609, %v2596, %v2610
      %vm2612 = vcmp.eq.s32.totalorder %v2607, 2
      %v2613 = vxor.u32 %v2596, 2147483648
      %v2614 = vsel %vm2612, %v2613, %v2604
      %v2615 = vsel %vm2608, %v2611, %v2614
      %v2616 = vsel %vm2605, nan, %v2615
      %v2617 = vand.u32 2147483647, %v442
      %vm2618 = vcmp.le.f32.partialorder %v2617, 0.7853982
      %vm2619 = vcmp.lt.s32.totalorder %v442, 0
      %v2620 = vand.u32 %v442, 2139095040
      %v2621 = vshrl.u32 %v2620, 23
      %v2622 = vsub.s32 %v2621, 127
      %v2623 = vand.u32 2147483647, %v442
      %v2624 = vand.u32 %v2623, 8388607
      %v2625 = vor.u32 %v2624, 8388608
      %v2626 = vsub.s32 0, %v2625
      %v2627 = vadd.s32 %v2622, 1
      %vm2628 = vcmp.gt.s32.totalorder %v2627, 0
      %v2629 = vsel %vm2628, %v2627, 0
      %v2630 = vshrl.u32 %v2629, 5
      %v2631 = vand.u32 %v2629, 31
      %v2632 = vsub.s32 32, %v2631
      %v2633 = vshrl.u32 683565275, %v2632
      %v2634 = vshll.u32 683565275, %v2631
      %v2635 = vshrl.u32 2475754826, %v2632
      %v2636 = vor.u32 %v2634, %v2635
      %v2637 = vshll.u32 2475754826, %v2631
      %v2638 = vshrl.u32 2131351028, %v2632
      %v2639 = vor.u32 %v2637, %v2638
      %v2640 = vshll.u32 2131351028, %v2631
      %v2641 = vshrl.u32 2102212464, %v2632
      %v2642 = vor.u32 %v2640, %v2641
      %v2643 = vshll.u32 2102212464, %v2631
      %v2644 = vshrl.u32 920167782, %v2632
      %v2645 = vor.u32 %v2643, %v2644
      %v2646 = vshll.u32 920167782, %v2631
      %v2647 = vshrl.u32 1326507024, %v2632
      %v2648 = vor.u32 %v2646, %v2647
      %vm2649 = vcmp.lt.s32.totalorder %v2630, 1
      %vm2650 = vcmp.lt.s32.totalorder %v2630, 2
      %vm2651 = vcmp.lt.s32.totalorder %v2630, 3
      %vm2652 = vcmp.lt.s32.totalorder %v2630, 4
      %v2653 = vsel %vm2649, %v2633, %v2636
      %v2654 = vsel %vm2652, %v2642, 2102212464
      %v2655 = vsel %vm2651, %v2639, %v2654
      %v2656 = vsel %vm2650, %v2653, %v2655
      %v2657 = vsel %vm2649, %v2636, %v2639
      %v2658 = vsel %vm2652, %v2645, 920167782
      %v2659 = vsel %vm2651, %v2642, %v2658
      %v2660 = vsel %vm2650, %v2657, %v2659
      %v2661 = vsel %vm2649, %v2639, %v2642
      %v2662 = vsel %vm2652, %v2648, 1326507024
      %v2663 = vsel %vm2651, %v2645, %v2662
      %v2664 = vsel %vm2650, %v2661, %v2663
      %v2665 = vshll.u32 %v2625, 8
      %v2666 = vand.u32 %v2665, 65535
      %v2667 = vshrl.u32 %v2665, 16
      %v2668 = vand.u32 %v2664, 65535
      %v2669 = vshrl.u32 %v2664, 16
      %v2670 = vmul.u32 %v2666, %v2668
      %v2671 = vmul.u32 %v2666, %v2669
      %v2672 = vmul.u32 %v2667, %v2668
      %v2673 = vmul.u32 %v2667, %v2669
      %v2674 = vshll.u32 %v2671, 16
      %v2675 = vshrl.u32 %v2671, 16
      %v2676 = vshll.u32 %v2672, 16
      %v2677 = vshrl.u32 %v2672, 16
      %vm2678 = vc.u32 %v2670, %v2674
      %v2679 = vsel %vm2678, 1, 0
      %v2680 = vadd.s32 %v2670, %v2674
      %v2681 = vadd.s32 %v2673, %v2679
      %vm2682 = vc.u32 %v2680, %v2676
      %v2683 = vsel %vm2682, 1, 0
      %v2684 = vadd.s32 %v2680, %v2676
      %v2685 = vadd.s32 %v2681, %v2683
      %v2686 = vadd.s32 %v2685, %v2675
      %v2687 = vadd.s32 %v2686, %v2677
      %v2688 = vand.u32 %v2665, 65535
      %v2689 = vshrl.u32 %v2665, 16
      %v2690 = vand.u32 %v2660, 65535
      %v2691 = vshrl.u32 %v2660, 16
      %v2692 = vmul.u32 %v2688, %v2690
      %v2693 = vmul.u32 %v2688, %v2691
      %v2694 = vmul.u32 %v2689, %v2690
      %v2695 = vmul.u32 %v2689, %v2691
      %v2696 = vshll.u32 %v2693, 16
      %v2697 = vshrl.u32 %v2693, 16
      %v2698 = vshll.u32 %v2694, 16
      %v2699 = vshrl.u32 %v2694, 16
      %vm2700 = vc.u32 %v2692, %v2696
      %v2701 = vsel %vm2700, 1, 0
      %v2702 = vadd.s32 %v2692, %v2696
      %v2703 = vadd.s32 %v2695, %v2701
      %vm2704 = vc.u32 %v2702, %v2698
      %v2705 = vsel %vm2704, 1, 0
      %v2706 = vadd.s32 %v2702, %v2698
      %v2707 = vadd.s32 %v2703, %v2705
      %v2708 = vadd.s32 %v2707, %v2697
      %v2709 = vadd.s32 %v2708, %v2699
      %v2710 = vmul.u32 %v2665, %v2656
      %v2711 = vadd.s32 %v2687, %v2706
      %vm2712 = vc.u32 %v2687, %v2706
      %v2713 = vadd.s32 %v2709, 1
      %v2714 = vsel %vm2712, %v2713, %v2709
      %v2715 = vadd.s32 %v2710, %v2714
      %v2716 = vadd.s32 %v2715, 536870912
      %v2717 = vshrl.u32 %v2716, 30
      %v2718 = vshll.u32 %v2717, 30
      %v2719 = vsub.s32 %v2715, %v2718
      %vm2720 = vcmp.lt.s32.totalorder %v2719, 0
      %v2721 = vsub.s32 0, %v2719
      %v2722 = vsel %vm2720, %v2721, %v2719
      %v2723 = vclz %v2722
      %v2724 = vsub.s32 %v2723, 2
      %vm2725 = vcmp.gt.s32.totalorder 0, %v2724
      %v2726 = vsel %vm2725, 0, %v2724
      %v2727 = vsub.s32 32, %v2726
      %v2728 = vshll.u32 %v2719, %v2726
      %v2729 = vshrl.u32 %v2711, %v2727
      %v2730 = vor.u32 %v2728, %v2729
      %v2731 = vsub.s32 4294967266, %v2726
      %v2732 = vadd.s32 %v2731, 127
      %v2733 = vshll.u32 %v2732, 23
      %v2734 = vor.u32 4788187, %v2733
      %v2735 = vand.u32 2147483647, %v2734
      %v2737 = vcvt.s32.f32 %v2730
      %v2738 = vmul.f32 %v2737, %v2735
      %v2739 = vxor.u32 %v2738, 2147483648
      %v2740 = vsel %vm2619, %v2739, %v2738
      %v2741 = vsub.s32 4, %v2717
      %v2742 = vsel %vm2619, %v2741, %v2717
      %v2743 = vsel %vm2618, %v442, %v2740
      %v2744 = vsel %vm2618, 0, %v2742
      %v2745 = vmul.f32 %v2743, %v2743
      %v2746 = vmul.f32 %v2745, -0.001358992
      %v2747 = vadd.f32 %v2746, 0.041655596
      %v2748 = vmul.f32 %v2745, %v2747
      %v2749 = vadd.f32 %v2748, -0.4999988
      %v2750 = vmul.f32 %v2745, %v2749
      %v2751 = vadd.f32 1.0, %v2750
      %v2752 = vmul.f32 %v2743, %v2743
      %v2753 = vmul.f32 %v2752, -0.00019511016
      %v2754 = vadd.f32 %v2753, 0.008332121
      %v2755 = vmul.f32 %v2752, %v2754
      %v2756 = vadd.f32 %v2755, -0.16666654
      %v2757 = vmul.f32 %v2752, %v2756
      %v2758 = vadd.f32 %v2757, 1.0
      %v2759 = vmul.f32 %v2758, %v2743
      %vm2760 = vweird.f32 %v442
      %v2761 = vadd.s32 %v2744, 3
      %v2762 = vand.u32 %v2761, 3
      %vm2763 = vcmp.lt.s32.totalorder %v2762, 2
      %vm2764 = vcmp.eq.s32.totalorder %v2762, 0
      %v2765 = vxor.u32 %v2759, 2147483648
      %v2766 = vsel %vm2764, %v2751, %v2765
      %vm2767 = vcmp.eq.s32.totalorder %v2762, 2
      %v2768 = vxor.u32 %v2751, 2147483648
      %v2769 = vsel %vm2767, %v2768, %v2759
      %v2770 = vsel %vm2763, %v2766, %v2769
      %v2771 = vsel %vm2760, nan, %v2770
      %v2772 = vand.u32 2147483647, %v445
      %vm2773 = vcmp.le.f32.partialorder %v2772, 0.7853982
      %vm2774 = vcmp.lt.s32.totalorder %v445, 0
      %v2775 = vand.u32 %v445, 2139095040
      %v2776 = vshrl.u32 %v2775, 23
      %v2777 = vsub.s32 %v2776, 127
      %v2778 = vand.u32 2147483647, %v445
      %v2779 = vand.u32 %v2778, 8388607
      %v2780 = vor.u32 %v2779, 8388608
      %v2781 = vsub.s32 0, %v2780
      %v2782 = vadd.s32 %v2777, 1
      %vm2783 = vcmp.gt.s32.totalorder %v2782, 0
      %v2784 = vsel %vm2783, %v2782, 0
      %v2785 = vshrl.u32 %v2784, 5
      %v2786 = vand.u32 %v2784, 31
      %v2787 = vsub.s32 32, %v2786
      %v2788 = vshrl.u32 683565275, %v2787
      %v2789 = vshll.u32 683565275, %v2786
      %v2790 = vshrl.u32 2475754826, %v2787
      %v2791 = vor.u32 %v2789, %v2790
      %v2792 = vshll.u32 2475754826, %v2786
      %v2793 = vshrl.u32 2131351028, %v2787
      %v2794 = vor.u32 %v2792, %v2793
      %v2795 = vshll.u32 2131351028, %v2786
      %v2796 = vshrl.u32 2102212464, %v2787
      %v2797 = vor.u32 %v2795, %v2796
      %v2798 = vshll.u32 2102212464, %v2786
      %v2799 = vshrl.u32 920167782, %v2787
      %v2800 = vor.u32 %v2798, %v2799
      %v2801 = vshll.u32 920167782, %v2786
      %v2802 = vshrl.u32 1326507024, %v2787
      %v2803 = vor.u32 %v2801, %v2802
      %vm2804 = vcmp.lt.s32.totalorder %v2785, 1
      %vm2805 = vcmp.lt.s32.totalorder %v2785, 2
      %vm2806 = vcmp.lt.s32.totalorder %v2785, 3
      %vm2807 = vcmp.lt.s32.totalorder %v2785, 4
      %v2808 = vsel %vm2804, %v2788, %v2791
      %v2809 = vsel %vm2807, %v2797, 2102212464
      %v2810 = vsel %vm2806, %v2794, %v2809
      %v2811 = vsel %vm2805, %v2808, %v2810
      %v2812 = vsel %vm2804, %v2791, %v2794
      %v2813 = vsel %vm2807, %v2800, 920167782
      %v2814 = vsel %vm2806, %v2797, %v2813
      %v2815 = vsel %vm2805, %v2812, %v2814
      %v2816 = vsel %vm2804, %v2794, %v2797
      %v2817 = vsel %vm2807, %v2803, 1326507024
      %v2818 = vsel %vm2806, %v2800, %v2817
      %v2819 = vsel %vm2805, %v2816, %v2818
      %v2820 = vshll.u32 %v2780, 8
      %v2821 = vand.u32 %v2820, 65535
      %v2822 = vshrl.u32 %v2820, 16
      %v2823 = vand.u32 %v2819, 65535
      %v2824 = vshrl.u32 %v2819, 16
      %v2825 = vmul.u32 %v2821, %v2823
      %v2826 = vmul.u32 %v2821, %v2824
      %v2827 = vmul.u32 %v2822, %v2823
      %v2828 = vmul.u32 %v2822, %v2824
      %v2829 = vshll.u32 %v2826, 16
      %v2830 = vshrl.u32 %v2826, 16
      %v2831 = vshll.u32 %v2827, 16
      %v2832 = vshrl.u32 %v2827, 16
      %vm2833 = vc.u32 %v2825, %v2829
      %v2834 = vsel %vm2833, 1, 0
      %v2835 = vadd.s32 %v2825, %v2829
      %v2836 = vadd.s32 %v2828, %v2834
      %vm2837 = vc.u32 %v2835, %v2831
      %v2838 = vsel %vm2837, 1, 0
      %v2839 = vadd.s32 %v2835, %v2831
      %v2840 = vadd.s32 %v2836, %v2838
      %v2841 = vadd.s32 %v2840, %v2830
      %v2842 = vadd.s32 %v2841, %v2832
      %v2843 = vand.u32 %v2820, 65535
      %v2844 = vshrl.u32 %v2820, 16
      %v2845 = vand.u32 %v2815, 65535
      %v2846 = vshrl.u32 %v2815, 16
      %v2847 = vmul.u32 %v2843, %v2845
      %v2848 = vmul.u32 %v2843, %v2846
      %v2849 = vmul.u32 %v2844, %v2845
      %v2850 = vmul.u32 %v2844, %v2846
      %v2851 = vshll.u32 %v2848, 16
      %v2852 = vshrl.u32 %v2848, 16
      %v2853 = vshll.u32 %v2849, 16
      %v2854 = vshrl.u32 %v2849, 16
      %vm2855 = vc.u32 %v2847, %v2851
      %v2856 = vsel %vm2855, 1, 0
      %v2857 = vadd.s32 %v2847, %v2851
      %v2858 = vadd.s32 %v2850, %v2856
      %vm2859 = vc.u32 %v2857, %v2853
      %v2860 = vsel %vm2859, 1, 0
      %v2861 = vadd.s32 %v2857, %v2853
      %v2862 = vadd.s32 %v2858, %v2860
      %v2863 = vadd.s32 %v2862, %v2852
      %v2864 = vadd.s32 %v2863, %v2854
      %v2865 = vmul.u32 %v2820, %v2811
      %v2866 = vadd.s32 %v2842, %v2861
      %vm2867 = vc.u32 %v2842, %v2861
      %v2868 = vadd.s32 %v2864, 1
      %v2869 = vsel %vm2867, %v2868, %v2864
      %v2870 = vadd.s32 %v2865, %v2869
      %v2871 = vadd.s32 %v2870, 536870912
      %v2872 = vshrl.u32 %v2871, 30
      %v2873 = vshll.u32 %v2872, 30
      %v2874 = vsub.s32 %v2870, %v2873
      %vm2875 = vcmp.lt.s32.totalorder %v2874, 0
      %v2876 = vsub.s32 0, %v2874
      %v2877 = vsel %vm2875, %v2876, %v2874
      %v2878 = vclz %v2877
      %v2879 = vsub.s32 %v2878, 2
      %vm2880 = vcmp.gt.s32.totalorder 0, %v2879
      %v2881 = vsel %vm2880, 0, %v2879
      %v2882 = vsub.s32 32, %v2881
      %v2883 = vshll.u32 %v2874, %v2881
      %v2884 = vshrl.u32 %v2866, %v2882
      %v2885 = vor.u32 %v2883, %v2884
      %v2886 = vsub.s32 4294967266, %v2881
      %v2887 = vadd.s32 %v2886, 127
      %v2888 = vshll.u32 %v2887, 23
      %v2889 = vor.u32 4788187, %v2888
      %v2890 = vand.u32 2147483647, %v2889
      %v2892 = vcvt.s32.f32 %v2885
      %v2893 = vmul.f32 %v2892, %v2890
      %v2894 = vxor.u32 %v2893, 2147483648
      %v2895 = vsel %vm2774, %v2894, %v2893
      %v2896 = vsub.s32 4, %v2872
      %v2897 = vsel %vm2774, %v2896, %v2872
      %v2898 = vsel %vm2773, %v445, %v2895
      %v2899 = vsel %vm2773, 0, %v2897
      %v2900 = vmul.f32 %v2898, %v2898
      %v2901 = vmul.f32 %v2900, -0.001358992
      %v2902 = vadd.f32 %v2901, 0.041655596
      %v2903 = vmul.f32 %v2900, %v2902
      %v2904 = vadd.f32 %v2903, -0.4999988
      %v2905 = vmul.f32 %v2900, %v2904
      %v2906 = vadd.f32 1.0, %v2905
      %v2907 = vmul.f32 %v2898, %v2898
      %v2908 = vmul.f32 %v2907, -0.00019511016
      %v2909 = vadd.f32 %v2908, 0.008332121
      %v2910 = vmul.f32 %v2907, %v2909
      %v2911 = vadd.f32 %v2910, -0.16666654
      %v2912 = vmul.f32 %v2907, %v2911
      %v2913 = vadd.f32 %v2912, 1.0
      %v2914 = vmul.f32 %v2913, %v2898
      %vm2915 = vweird.f32 %v445
      %v2916 = vadd.s32 %v2899, 3
      %v2917 = vand.u32 %v2916, 3
      %vm2918 = vcmp.lt.s32.totalorder %v2917, 2
      %vm2919 = vcmp.eq.s32.totalorder %v2917, 0
      %v2920 = vxor.u32 %v2914, 2147483648
      %v2921 = vsel %vm2919, %v2906, %v2920
      %vm2922 = vcmp.eq.s32.totalorder %v2917, 2
      %v2923 = vxor.u32 %v2906, 2147483648
      %v2924 = vsel %vm2922, %v2923, %v2914
      %v2925 = vsel %vm2918, %v2921, %v2924
      %v2926 = vsel %vm2915, nan, %v2925
      %v2927 = vld [vmem:[%s3] sm:$0xff]
      %v2928 = vld [vmem:[%s3 + $0x8] sm:$0xff]
      %v2929 = vld [vmem:[%s3 + $0x10] sm:$0xff]
      %v2930 = vld [vmem:[%s3 + $0x18] sm:$0xff]
      %v2931 = vld [vmem:[%s3 + $0x20] sm:$0xff]
      %v2932 = vld [vmem:[%s3 + $0x28] sm:$0xff]
      %v2933 = vld [vmem:[%s3 + $0x30] sm:$0xff]
      %v2934 = vld [vmem:[%s3 + $0x38] sm:$0xff]
      %v2935 = vld [vmem:[%s3 + $0x40] sm:$0xff]
      %v2936 = vld [vmem:[%s3 + $0x48] sm:$0xff]
      %v2937 = vld [vmem:[%s3 + $0x50] sm:$0xff]
      %v2938 = vld [vmem:[%s3 + $0x58] sm:$0xff]
      %v2939 = vld [vmem:[%s3 + $0x60] sm:$0xff]
      %v2940 = vld [vmem:[%s3 + $0x68] sm:$0xff]
      %v2941 = vld [vmem:[%s3 + $0x70] sm:$0xff]
      %v2942 = vld [vmem:[%s3 + $0x78] sm:$0xff]
      %2944 = vset.pattern.permute.xlu0 0
      %2945 = vperm.xlu0 %2944, %v2927
      %v2946 = vpop.permute.xlu0 %2945
      %2949 = vset.pattern.permute.xlu0 0
      %2950 = vperm.xlu0 %2949, %v2928
      %v2951 = vpop.permute.xlu0 %2950
      %2954 = vset.pattern.permute.xlu0 0
      %2955 = vperm.xlu0 %2954, %v2929
      %v2956 = vpop.permute.xlu0 %2955
      %2959 = vset.pattern.permute.xlu0 0
      %2960 = vperm.xlu0 %2959, %v2930
      %v2961 = vpop.permute.xlu0 %2960
      %2964 = vset.pattern.permute.xlu0 0
      %2965 = vperm.xlu0 %2964, %v2931
      %v2966 = vpop.permute.xlu0 %2965
      %2969 = vset.pattern.permute.xlu0 0
      %2970 = vperm.xlu0 %2969, %v2932
      %v2971 = vpop.permute.xlu0 %2970
      %2974 = vset.pattern.permute.xlu0 0
      %2975 = vperm.xlu0 %2974, %v2933
      %v2976 = vpop.permute.xlu0 %2975
      %2979 = vset.pattern.permute.xlu0 0
      %2980 = vperm.xlu0 %2979, %v2934
      %v2981 = vpop.permute.xlu0 %2980
      %2984 = vset.pattern.permute.xlu0 0
      %2985 = vperm.xlu0 %2984, %v2935
      %v2986 = vpop.permute.xlu0 %2985
      %2989 = vset.pattern.permute.xlu0 0
      %2990 = vperm.xlu0 %2989, %v2936
      %v2991 = vpop.permute.xlu0 %2990
      %2994 = vset.pattern.permute.xlu0 0
      %2995 = vperm.xlu0 %2994, %v2937
      %v2996 = vpop.permute.xlu0 %2995
      %2999 = vset.pattern.permute.xlu0 0
      %3000 = vperm.xlu0 %2999, %v2938
      %v3001 = vpop.permute.xlu0 %3000
      %3004 = vset.pattern.permute.xlu0 0
      %3005 = vperm.xlu0 %3004, %v2939
      %v3006 = vpop.permute.xlu0 %3005
      %3009 = vset.pattern.permute.xlu0 0
      %3010 = vperm.xlu0 %3009, %v2940
      %v3011 = vpop.permute.xlu0 %3010
      %3014 = vset.pattern.permute.xlu0 0
      %3015 = vperm.xlu0 %3014, %v2941
      %v3016 = vpop.permute.xlu0 %3015
      %3019 = vset.pattern.permute.xlu0 0
      %3020 = vperm.xlu0 %3019, %v2942
      %v3021 = vpop.permute.xlu0 %3020
      %v3023 = vmul.f32 %v601, %v2946
      %v3024 = vmul.f32 %v756, %v2951
      %v3025 = vmul.f32 %v911, %v2956
      %v3026 = vmul.f32 %v1066, %v2961
      %v3027 = vmul.f32 %v1221, %v2966
      %v3028 = vmul.f32 %v1376, %v2971
      %v3029 = vmul.f32 %v1531, %v2976
      %v3030 = vmul.f32 %v1686, %v2981
      %v3031 = vmul.f32 %v1841, %v2986
      %v3032 = vmul.f32 %v1996, %v2991
      %v3033 = vmul.f32 %v2151, %v2996
      %v3034 = vmul.f32 %v2306, %v3001
      %v3035 = vmul.f32 %v2461, %v3006
      %v3036 = vmul.f32 %v2616, %v3011
      %v3037 = vmul.f32 %v2771, %v3016
      %v3038 = vmul.f32 %v2926, %v3021
      %v3039 = vadd.f32 %v3023, %v3024
      %v3040 = vadd.f32 %v3039, %v3025
      %v3041 = vadd.f32 %v3040, %v3026
      %v3042 = vadd.f32 %v3041, %v3027
      %v3043 = vadd.f32 %v3042, %v3028
      %v3044 = vadd.f32 %v3043, %v3029
      %v3045 = vadd.f32 %v3044, %v3030
      %v3046 = vadd.f32 %v3045, %v3031
      %v3047 = vadd.f32 %v3046, %v3032
      %v3048 = vadd.f32 %v3047, %v3033
      %v3049 = vadd.f32 %v3048, %v3034
      %v3050 = vadd.f32 %v3049, %v3035
      %v3051 = vadd.f32 %v3050, %v3036
      %v3052 = vadd.f32 %v3051, %v3037
      %v3053 = vadd.f32 %v3052, %v3038
      %v3054 = vrot.slane %v3053, 4
      %v3055 = vadd.f32 %v3053, %v3054
      %v3056 = vrot.slane %v3055, 2
      %v3057 = vadd.f32 %v3055, %v3056
      %v3058 = vrot.slane %v3057, 1
      %v3059 = vadd.f32 %v3057, %v3058
      %v3060 = vld [vmem:[#allocation2] sm:$0x1]
      %3062 = vset.pattern.permute.xlu0 0
      %3063 = vperm.xlu0 %3062, %v3060
      %v3064 = vpop.permute.xlu0 %3063
      %v3066 = vperm.slane %v3064, 0
      %v3067 = vadd.f32 %v3059, %v3066
      %3068 = vst [vmem:[%s219] sm:$0x1] %v3067
      %p3069 = scmp.lt.s32.totalorder %s18, 2
      %s3070 = scalar_select %p3069, %s18, 2
      %s3071 = scalar_lea.vmem %s5, %s3070
      // Predicated region
      $region41: #{network_forward.1} parent=39 // pred_check
        %p3072 = pneg %p146
      $region42: #{network_forward.1} parent=39 // pred_check_branch
        %3074 = sbr.rel (%p3072) target = $region44
      $region43: #{network_forward.1} parent=39 // pred_region
        _
      $region44: #{network_forward.1} parent=39 // pred_fallthru
        _
    $region40: #{network_forward.1} parent=5 // pred_fallthru
      _
    %p3075 = scmp.le.s32.totalorder 2, %s13
    // Predicated region
    $region45: #{network_forward.1} parent=5 // pred_check
      %p3076 = pneg %p3075
    $region46: #{network_forward.1} parent=5 // pred_check_branch
      %3078 = sbr.rel (%p3076) target = $region48
    $region47: #{network_forward.1} parent=5 // pred_region
      %s3079 = ssub.s32 %s13, 2
      // Predicated region
      $region49: #{network_forward.1} parent=47 // pred_check
        %p3080 = pneg %p152
      $region50: #{network_forward.1} parent=47 // pred_check_branch
        %3082 = sbr.rel (%p3080) target = $region52
      $region51: #{network_forward.1} parent=47 // pred_region
        %p3083 = scmp.lt.s32.totalorder %s19, 2
        %s3084 = scalar_select %p3083, %s19, 2
        %s3085 = scalar_lea.vmem %s5, %s3084
      $region52: #{network_forward.1} parent=47 // pred_fallthru
        _
    $region48: #{network_forward.1} parent=5 // pred_fallthru
      _
  $region6: #{network_forward.1} parent=0 // loop_footer
    %s17 = sadd.s32 1, %s13
  $region7: #{network_forward.1} parent=0 // loop_footer_branch
    %12 = sbr.rel target = $region3
  $region8: #{network_forward.1} parent=0 // loop_exit
    _

</llo_original>
